<compile_context>
chip_gen: v7x
topology: tpu7x:2x2x1
jax: 0.10.0
libtpu: 0.0.40
codegen_flags: <defaults>
</compile_context>

<pallas_src>
import functools
import math

import jax
import jax.numpy as jnp
from jax.experimental import pallas as pl
from jax.experimental.pallas import tpu as pltpu

_NEG_INF = -1e30  # finite "-inf" so the chunked online softmax never computes inf-inf


def _round_up(a, b):
    return (a + b - 1) // b * b


def _vmem_capacity_bytes():
    try:
        info = pltpu.get_tpu_info()
        cap = int(getattr(info, "vmem_capacity_bytes", 0) or 0)
        if cap > 0:
            return cap
    except Exception:
        pass
    return 64 << 20  # conservative default (v7x per-core VMEM)


@functools.lru_cache(maxsize=None)
def _single_buffer_mode():
    """Return pl.Buffered(1) if this JAX/Mosaic build supports it, else None."""
    try:
        mode = pl.Buffered(1)

        def _probe(x_ref, o_ref):
            o_ref[...] = x_ref[...]

        fn = pl.pallas_call(
            _probe,
            out_shape=jax.ShapeDtypeStruct((8, 128), jnp.float32),
            grid=(2,),
            in_specs=[pl.BlockSpec((8, 128), lambda i: (0, 0), pipeline_mode=mode)],
            out_specs=pl.BlockSpec((8, 128), lambda i: (0, 0)),
        )
        jax.block_until_ready(fn(jnp.ones((8, 128), jnp.float32)))
        return mode
    except Exception:
        return None


def _vmem_limit_bytes(*, C, hidden, Lp, tile_l, k_chunk, n_chunks, num_heads,
                      head_dim, single_buffered, cap):
    wbuf = 1 if single_buffered else 2
    weights_bf16 = 2 * (C * C + C * 2 * C + C * C + C * hidden + hidden * C)
    biases_f32 = 4 * (C + 2 * C + C + hidden + C)
    est = (weights_bf16 + biases_f32) * wbuf
    est += Lp * C * 4 * wbuf                                    # xfull (f32)
    est += tile_l * C * 4 * 2 * 2                               # x tile in + out
    est += n_chunks * tile_l * k_chunk * 4 * 2                  # bias block
    est += 6 * C * 4 * 2                                        # ada vectors
    est += 2 * n_chunks * num_heads * head_dim * k_chunk * 2    # K/V scratch (bf16)
    est += tile_l * C * 4                                       # attn-out scratch
    est += num_heads * tile_l * k_chunk * 4 * 4                 # score/prob chunk
    est += num_heads * tile_l * head_dim * 4 * 3                # acc / m / l
    est += Lp * C * 4 * 3 + Lp * 2 * C * 4                      # K/V fill temporaries
    est += tile_l * max(hidden, 2 * C) * 4 * 3                  # FFN / QKV temporaries
    est = int(est * 1.25) + (8 << 20)
    return int(min(cap, max(32 << 20, est)))


def _adaln_block_kernel(
    x_ref, xfull_ref, ada_ref, bias_ref,
    q_w_ref, q_b_ref, kv_w_ref, kv_b_ref,
    proj_w_ref, proj_b_ref,
    fc1_w_ref, fc1_b_ref, fc2_w_ref, fc2_b_ref,
    o_ref,
    k_scr, v_scr, att_scr,
    *, num_heads, head_dim, n_chunks, k_chunk, ln_eps):
    H, hd, TK = num_heads, head_dim, k_chunk
    C = H * hd
    bf16 = jnp.bfloat16
    f32 = jnp.float32

    ada = ada_ref[0].astype(f32)                      # (6, C)
    gamma1, gamma2 = ada[0:1], ada[1:2]
    scale1, scale2 = ada[2:3], ada[3:4]
    shift1, shift2 = ada[4:5], ada[5:6]

    def layernorm(h):  # no elementwise affine (ln_wo_grad)
        mu = jnp.mean(h, axis=-1, keepdims=True)
        var = jnp.mean(jnp.square(h - mu), axis=-1, keepdims=True)
        return (h - mu) * jax.lax.rsqrt(var + ln_eps)

    # ---- K/V for the whole (padded) sequence: once per batch, chunk-major VMEM ----
    @pl.when(pl.program_id(1) == 0)
    def _():
        xf = xfull_ref[0].astype(f32)                                       # (Lp, C)
        h1f = layernorm(xf) * (scale1 + 1.0) + shift1
        kv = jnp.dot(h1f.astype(bf16), kv_w_ref[...],
                     preferred_element_type=f32) + kv_b_ref[...]            # (Lp, 2C)
        for c in range(n_chunks):                       # static fill loop, once/batch
            kc = kv[c * TK:(c + 1) * TK, 0:C]                               # (TK, C)
            vc = kv[c * TK:(c + 1) * TK, C:2 * C]                           # (TK, C)
            # K stored pre-transposed (H, hd, TK) so scores are plain (TL,hd)x(hd,TK).
            k_scr[c] = jnp.transpose(kc, (1, 0)).reshape(H, hd, TK).astype(bf16)
            v_scr[c] = jnp.transpose(vc.reshape(TK, H, hd), (1, 0, 2)).astype(bf16)

    x = x_ref[0].astype(f32)                                                # (TL, C)
    TL = x.shape[0]

    # ---- attention branch: q rows of this tile vs cached full K/V (chunked) ----
    h1 = layernorm(x) * (scale1 + 1.0) + shift1
    # attn scale is pre-folded into q_w / q_b at prepare_params() time.
    q = jnp.dot(h1.astype(bf16), q_w_ref[...],
                preferred_element_type=f32) + q_b_ref[...]                  # (TL, C)
    qh = jnp.transpose(q.reshape(TL, H, hd), (1, 0, 2)).astype(bf16)        # (H, TL, hd)

    def chunk_body(c, carry):                           # flash-style online softmax
        m, l, acc = carry
        s = jnp.einsum('hqd,hdk->hqk', qh, k_scr[c],
                       preferred_element_type=f32)                          # (H, TL, TK)
        s = s + bias_ref[c].astype(f32)[None]
        m_new = jnp.maximum(m, jnp.max(s, axis=-1, keepdims=True))
        alpha = jnp.exp(m - m_new)
        p = jnp.exp(s - m_new)
        l = alpha * l + jnp.sum(p, axis=-1, keepdims=True)
        acc = alpha * acc + jnp.einsum('hqk,hkd->hqd', p.astype(bf16), v_scr[c],
                                       preferred_element_type=f32)
        return m_new, l, acc

    m0 = jnp.full((H, TL, 1), _NEG_INF, f32)
    l0 = jnp.zeros((H, TL, 1), f32)
    acc0 = jnp.zeros((H, TL, hd), f32)
    _, l, acc = jax.lax.fori_loop(0, n_chunks, chunk_body, (m0, l0, acc0))

    # Normalize AFTER the PV matmul (H*TL*hd multiplies instead of H*TL*L).
    inv_l = pl.reciprocal(l, approx=True)                                   # (H, TL, 1)
    # Assemble the (TL, C) attention output with static lane-slice writes (no
    # 3-D transpose / relayout per tile).
    for h in range(H):
        att_scr[:, h * hd:(h + 1) * hd] = acc[h] * inv_l[h]

    attn_out = jnp.dot(att_scr[...].astype(bf16), proj_w_ref[...],
                       preferred_element_type=f32) + proj_b_ref[...]
    x = x + attn_out * gamma1

    # ---- FFN branch ----
    h2 = layernorm(x) * (scale2 + 1.0) + shift2
    f = jnp.dot(h2.astype(bf16), fc1_w_ref[...],
                preferred_element_type=f32) + fc1_b_ref[...]
    c0 = math.sqrt(2.0 / math.pi)                                           # GELU(tanh)
    f = 0.5 * f * (1.0 + jnp.tanh(c0 * (f + 0.044715 * f * f * f)))
    f = jnp.dot(f.astype(bf16), fc2_w_ref[...],
                preferred_element_type=f32) + fc2_b_ref[...]
    x = x + f * gamma2

    o_ref[0] = x.astype(o_ref.dtype)


def prepare_params(params, *, num_heads):
    """One-time parameter prep: fold attn scale into q, cast matmul weights to bf16."""
    C = params['proj_w'].shape[0]
    head_dim = C // num_heads
    scale = 0.25 / math.sqrt(head_dim)
    bf16, f32 = jnp.bfloat16, jnp.float32
    return {
        'ada_w': params['ada_w'].astype(f32),
        'ada_b': params['ada_b'].astype(f32),
        'q_w': (params['qkv_w'][:, :C] * scale).astype(bf16),
        'q_b': (params['qkv_b'][:, :C] * scale).astype(f32),
        'kv_w': params['qkv_w'][:, C:].astype(bf16),
        'kv_b': params['qkv_b'][:, C:].astype(f32),
        'proj_w': params['proj_w'].astype(bf16),
        'proj_b': params['proj_b'].astype(f32),
        'fc1_w': params['fc1_w'].astype(bf16),
        'fc1_b': params['fc1_b'].astype(f32),
        'fc2_w': params['fc2_w'].astype(bf16),
        'fc2_b': params['fc2_b'].astype(f32),
    }


def adaln_self_attn(x, cond_BD, attn_bias, prep, *, num_heads, ln_eps=1e-6,
                    tile_l=None, k_chunk=None):
    B, L, C = x.shape
    head_dim = C // num_heads
    hidden = prep['fc1_w'].shape[1]
    bf16 = jnp.bfloat16

    # ---- adaLN conditioning hoisted out of the kernel (tiny M=1 matmul) ----
    silu = cond_BD * jax.nn.sigmoid(cond_BD)
    ada = (silu @ prep['ada_w'] + prep['ada_b']).reshape(B, 6, C).astype(jnp.float32)

    # ---- tile / chunk selection (generation aware), sequence padding ----
    vmem_cap = _vmem_capacity_bytes()
    if tile_l is None:
        tile_l = 256 if vmem_cap >= (100 << 20) else 128
        if L <= tile_l:
            tile_l = L
    assert tile_l == L or tile_l % 8 == 0, "tile_l must be a multiple of 8 (or == L)"
    Lp = _round_up(L, tile_l)
    n_lt = Lp // tile_l
    if k_chunk is None:
        k_chunk = tile_l
    assert Lp % k_chunk == 0, "k_chunk must divide the padded sequence length"
    n_chunks = Lp // k_chunk

    # -inf-safe bias (finite large-negative), pad key columns as fully masked.
    bias = jnp.maximum(attn_bias.astype(jnp.float32), _NEG_INF)
    if Lp != L:
        x_p = jnp.pad(x, ((0, 0), (0, Lp - L), (0, 0)))
        bias = jnp.pad(bias, ((0, Lp - L), (0, 0)))                      # pad q rows: 0
        bias = jnp.pad(bias, ((0, 0), (0, Lp - L)), constant_values=_NEG_INF)
    else:
        x_p = x
    # chunk-major bias layout: (n_lt * n_chunks, tile_l, k_chunk)
    bias_c = (bias.reshape(n_lt, tile_l, n_chunks, k_chunk)
                  .transpose(0, 2, 1, 3)
                  .reshape(n_lt * n_chunks, tile_l, k_chunk))

    # ---- BlockSpecs ----
    mode = _single_buffer_mode()   # pl.Buffered(1) or None

    def const_spec(arr):           # never changes block index -> single-buffer if possible
        nd = arr.ndim
        if mode is not None:
            return pl.BlockSpec(arr.shape, lambda b, lt, _n=nd: (0,) * _n,
                                pipeline_mode=mode)
        return pl.BlockSpec(arr.shape, lambda b, lt, _n=nd: (0,) * _n)

    if mode is not None:
        xfull_spec = pl.BlockSpec((1, Lp, C), lambda b, lt: (b, 0, 0), pipeline_mode=mode)
    else:
        xfull_spec = pl.BlockSpec((1, Lp, C), lambda b, lt: (b, 0, 0))

    in_specs = [
        pl.BlockSpec((1, tile_l, C), lambda b, lt: (b, lt, 0)),          # x: q-row tile
        xfull_spec,                                                      # x: full seq (K/V)
        pl.BlockSpec((1, 6, C), lambda b, lt: (b, 0, 0)),                # ada vectors
        pl.BlockSpec((n_chunks, tile_l, k_chunk), lambda b, lt: (lt, 0, 0)),  # bias chunks
        const_spec(prep['q_w']), const_spec(prep['q_b']),
        const_spec(prep['kv_w']), const_spec(prep['kv_b']),
        const_spec(prep['proj_w']), const_spec(prep['proj_b']),
        const_spec(prep['fc1_w']), const_spec(prep['fc1_b']),
        const_spec(prep['fc2_w']), const_spec(prep['fc2_b']),
    ]
    out_spec = pl.BlockSpec((1, tile_l, C), lambda b, lt: (b, lt, 0))

    kernel = functools.partial(_adaln_block_kernel, num_heads=num_heads,
                               head_dim=head_dim, n_chunks=n_chunks,
                               k_chunk=k_chunk, ln_eps=ln_eps)

    vmem_limit = _vmem_limit_bytes(
        C=C, hidden=hidden, Lp=Lp, tile_l=tile_l, k_chunk=k_chunk,
        n_chunks=n_chunks, num_heads=num_heads, head_dim=head_dim,
        single_buffered=mode is not None, cap=vmem_cap)

    out = pl.pallas_call(
        kernel,
        out_shape=jax.ShapeDtypeStruct((B, Lp, C), x.dtype),
        grid_spec=pltpu.PrefetchScalarGridSpec(
            num_scalar_prefetch=0,
            grid=(B, n_lt),
            in_specs=in_specs,
            out_specs=out_spec,
            scratch_shapes=[
                pltpu.VMEM((n_chunks, num_heads, head_dim, k_chunk), bf16),  # K^T chunks
                pltpu.VMEM((n_chunks, num_heads, k_chunk, head_dim), bf16),  # V chunks
                pltpu.VMEM((tile_l, C), jnp.float32),                        # attn out asm
            ]),
        compiler_params=pltpu.CompilerParams(
            dimension_semantics=("parallel", "arbitrary"),
            vmem_limit_bytes=vmem_limit),
    )(x_p, x_p, ada, bias_c,
      prep['q_w'], prep['q_b'], prep['kv_w'], prep['kv_b'],
      prep['proj_w'], prep['proj_b'],
      prep['fc1_w'], prep['fc1_b'], prep['fc2_w'], prep['fc2_b'])

    return out[:, :L, :] if Lp != L else out


def reference(x, cond_BD, attn_bias, params, *, num_heads, ln_eps=1e-6):
    """Pure-JAX f32 mirror of the PyTorch forward, for verification."""
    B, L, C = x.shape
    hd = C // num_heads
    scale = 0.25 / math.sqrt(hd)

    silu = cond_BD * jax.nn.sigmoid(cond_BD)
    ada = silu @ params['ada_w'] + params['ada_b'][0]                 # (B, 6C)
    g1, g2, s1, s2, sh1, sh2 = [ada[:, None, i * C:(i + 1) * C] for i in range(6)]

    def ln(h):
        mu = h.mean(-1, keepdims=True)
        var = ((h - mu) ** 2).mean(-1, keepdims=True)
        return (h - mu) * jax.lax.rsqrt(var + ln_eps)

    h1 = ln(x) * (s1 + 1.0) + sh1
    qkv = (h1 @ params['qkv_w'] + params['qkv_b'][0]).reshape(B, L, 3, num_heads, hd)
    q = qkv[:, :, 0].transpose(0, 2, 1, 3)
    k = qkv[:, :, 1].transpose(0, 2, 1, 3)
    v = qkv[:, :, 2].transpose(0, 2, 1, 3)
    att = jnp.einsum('bhld,bhmd->bhlm', q * scale, k) + attn_bias[None, None]
    p = jax.nn.softmax(att, axis=-1)
    o = jnp.einsum('bhlm,bhmd->bhld', p, v).transpose(0, 2, 1, 3).reshape(B, L, C)
    o = o @ params['proj_w'] + params['proj_b'][0]
    x = x + o * g1

    h2 = ln(x) * (s2 + 1.0) + sh2
    f = h2 @ params['fc1_w'] + params['fc1_b'][0]
    f = 0.5 * f * (1.0 + jnp.tanh(math.sqrt(2.0 / math.pi) * (f + 0.044715 * f ** 3)))
    f = f @ params['fc2_w'] + params['fc2_b'][0]
    x = x + f * g2
    return x


def make_params(key, C, D, hidden):
    ks = jax.random.split(key, 12)
    n = lambda k, shape, s: (jax.random.normal(k, shape, jnp.float32) * s)
    q_bias = n(ks[0], (C,), 0.02)
    v_bias = n(ks[1], (C,), 0.02)
    zero_k_bias = jnp.zeros((C,), jnp.float32)            # registered buffer, always zero
    return {
        'ada_w':  n(ks[2], (D, 6 * C), 1.0 / math.sqrt(D)),
        'ada_b':  n(ks[3], (1, 6 * C), 0.02),
        'qkv_w':  n(ks[4], (C, 3 * C), 1.0 / math.sqrt(C)),     # mat_qkv has bias=False
        'qkv_b':  jnp.concatenate([q_bias, zero_k_bias, v_bias]).reshape(1, 3 * C),
        'proj_w': n(ks[5], (C, C), 1.0 / math.sqrt(C)),
        'proj_b': n(ks[6], (1, C), 0.02),
        'fc1_w':  n(ks[7], (C, hidden), 1.0 / math.sqrt(C)),
        'fc1_b':  n(ks[8], (1, hidden), 0.02),
        'fc2_w':  n(ks[9], (hidden, C), 1.0 / math.sqrt(hidden)),
        'fc2_b':  n(ks[10], (1, C), 0.02),
    }


if __name__ == "__main__":
    B, L, C, H, D = 2, 16, 32, 4, 16
    hidden = round(C * 4.0)

    key = jax.random.PRNGKey(0)
    k_x, k_c, k_b, k_p = jax.random.split(key, 4)
    x = jax.random.normal(k_x, (B, L, C), jnp.float32)
    cond_BD = jax.random.normal(k_c, (B, D), jnp.float32)

    # VAR-style block-causal bias (with -inf) plus noise: exercises the chunked
    # online softmax and the -inf clamping path.
    blk = jnp.arange(L) // 4
    causal = jnp.where(blk[:, None] >= blk[None, :], 0.0, -jnp.inf)
    attn_bias = causal + jax.random.normal(k_b, (L, L), jnp.float32) * 0.5

    params = make_params(k_p, C, D, hidden)
    prep = prepare_params(params, num_heads=H)        # one-time: scale fold + bf16 cast

    # Small tile / chunk overrides so the demo exercises multi-tile + multi-chunk paths.
    out = adaln_self_attn(x, cond_BD, attn_bias, prep, num_heads=H,
                          tile_l=8, k_chunk=8)
    out = jax.block_until_ready(out)

    ref = reference(x, cond_BD, attn_bias, params, num_heads=H)
    assert out.shape == (B, L, C)
    err = float(jnp.max(jnp.abs(out - ref)))
    maxref = float(jnp.max(jnp.abs(ref)))
    rel = err / (maxref + 1e-6)
    # bf16 MXU operands (f32 accumulation) + approx reciprocal vs f32 reference.
    assert err < 1.5e-1 and rel < 1e-1, f"max abs diff {err} (rel {rel})"

    print("KERNEL_OK")
</pallas_src>

<mosaic_0001>
module attributes {stable_mosaic.version = 11 : i64} {
  func.func @_probe(%arg0: i32, %arg1: memref<8x128xf32, #tpu.memory_space<vmem>>, %arg2: memref<8x128xf32, #tpu.memory_space<vmem>>) attributes {dimension_semantics = [#tpu.dimension_semantics<arbitrary>], iteration_bounds = array<i64: 2>, scalar_prefetch = 0 : i64, scratch_operands = 0 : i64, tpu.core_type = #tpu.core_type<tc>, window_params = [{pipeline_mode = #tpu.pipeline_mode<synchronous>, transform_indices = @transform_0, window_bounds = array<i64: 8, 128>}, {pipeline_mode = #tpu.pipeline_mode<synchronous>, transform_indices = @transform_1, window_bounds = array<i64: 8, 128>}]} {
    %c0 = arith.constant 0 : index
    %c0_0 = arith.constant 0 : index
    %0 = vector.load %arg1[%c0, %c0_0] : memref<8x128xf32, #tpu.memory_space<vmem>>, vector<8x128xf32>
    %c0_1 = arith.constant 0 : index
    %c0_2 = arith.constant 0 : index
    %1 = vector.load %arg2[%c0_1, %c0_2] : memref<8x128xf32, #tpu.memory_space<vmem>>, vector<8x128xf32>
    tpu.vector_store %arg2[%c0_1, %c0_2], %0 {strides = array<i32>} : memref<8x128xf32, #tpu.memory_space<vmem>>, vector<8x128xf32>,
    return
  }
  func.func @transform_0(%arg0: i32) -> (i32, i32) {
    %c0_i32 = arith.constant 0 : i32
    %c0_i32_0 = arith.constant 0 : i32
    %c0_i32_1 = arith.constant 0 : i32
    return %c0_i32, %c0_i32_0 : i32, i32
  }
  func.func @transform_1(%arg0: i32) -> (i32, i32) {
    %c0_i32 = arith.constant 0 : i32
    %c0_i32_0 = arith.constant 0 : i32
    %c0_i32_1 = arith.constant 0 : i32
    return %c0_i32, %c0_i32_0 : i32, i32
  }
}

module attributes {stable_mosaic.version = 11 : i64} {
  func.func @_adaln_block_kernel(%arg0: i32, %arg1: i32, %arg2: memref<1x8x32xf32, #tpu.memory_space<vmem>>, %arg3: memref<1x16x32xf32, #tpu.memory_space<vmem>>, %arg4: memref<1x6x32xf32, #tpu.memory_space<vmem>>, %arg5: memref<2x8x8xf32, #tpu.memory_space<vmem>>, %arg6: memref<32x32xbf16, #tpu.memory_space<vmem>>, %arg7: memref<1x32xf32, #tpu.memory_space<vmem>>, %arg8: memref<32x64xbf16, #tpu.memory_space<vmem>>, %arg9: memref<1x64xf32, #tpu.memory_space<vmem>>, %arg10: memref<32x32xbf16, #tpu.memory_space<vmem>>, %arg11: memref<1x32xf32, #tpu.memory_space<vmem>>, %arg12: memref<32x128xbf16, #tpu.memory_space<vmem>>, %arg13: memref<1x128xf32, #tpu.memory_space<vmem>>, %arg14: memref<128x32xbf16, #tpu.memory_space<vmem>>, %arg15: memref<1x32xf32, #tpu.memory_space<vmem>>, %arg16: memref<1x8x32xf32, #tpu.memory_space<vmem>>, %arg17: memref<2x4x8x8xbf16, #tpu.memory_space<vmem>>, %arg18: memref<2x4x8x8xbf16, #tpu.memory_space<vmem>>, %arg19: memref<8x32xf32, #tpu.memory_space<vmem>>) attributes {dimension_semantics = [#tpu.dimension_semantics<parallel>, #tpu.dimension_semantics<arbitrary>], iteration_bounds = array<i64: 2, 2>, scalar_prefetch = 0 : i64, scratch_operands = 3 : i64, tpu.core_type = #tpu.core_type<tc>, window_params = [{transform_indices = @transform_0, window_bounds = array<i64: 1, 8, 32>}, {transform_indices = @transform_1, window_bounds = array<i64: 1, 16, 32>}, {transform_indices = @transform_2, window_bounds = array<i64: 1, 6, 32>}, {transform_indices = @transform_3, window_bounds = array<i64: 2, 8, 8>}, {pipeline_mode = #tpu.pipeline_mode<synchronous>, transform_indices = @transform_4, window_bounds = array<i64: 32, 32>}, {pipeline_mode = #tpu.pipeline_mode<synchronous>, transform_indices = @transform_5, window_bounds = array<i64: 1, 32>}, {pipeline_mode = #tpu.pipeline_mode<synchronous>, transform_indices = @transform_6, window_bounds = array<i64: 32, 64>}, {pipeline_mode = #tpu.pipeline_mode<synchronous>, transform_indices = @transform_7, window_bounds = array<i64: 1, 64>}, {pipeline_mode = #tpu.pipeline_mode<synchronous>, transform_indices = @transform_8, window_bounds = array<i64: 32, 32>}, {pipeline_mode = #tpu.pipeline_mode<synchronous>, transform_indices = @transform_9, window_bounds = array<i64: 1, 32>}, {pipeline_mode = #tpu.pipeline_mode<synchronous>, transform_indices = @transform_10, window_bounds = array<i64: 32, 128>}, {pipeline_mode = #tpu.pipeline_mode<synchronous>, transform_indices = @transform_11, window_bounds = array<i64: 1, 128>}, {pipeline_mode = #tpu.pipeline_mode<synchronous>, transform_indices = @transform_12, window_bounds = array<i64: 128, 32>}, {pipeline_mode = #tpu.pipeline_mode<synchronous>, transform_indices = @transform_13, window_bounds = array<i64: 1, 32>}, {transform_indices = @transform_14, window_bounds = array<i64: 1, 8, 32>}]} {
    %c0 = arith.constant 0 : index
    %c0_0 = arith.constant 0 : index
    %c0_1 = arith.constant 0 : index
    %0 = vector.load %arg4[%c0, %c0_0, %c0_1] : memref<1x6x32xf32, #tpu.memory_space<vmem>>, vector<1x6x32xf32>
    %1 = vector.shape_cast %0 : vector<1x6x32xf32> to vector<6x32xf32>
    %2 = vector.extract_strided_slice %1 {offsets = [0, 0], sizes = [1, 32], strides = [1, 1]} : vector<6x32xf32> to vector<1x32xf32>
    %3 = vector.extract_strided_slice %1 {offsets = [1, 0], sizes = [1, 32], strides = [1, 1]} : vector<6x32xf32> to vector<1x32xf32>
    %4 = vector.extract_strided_slice %1 {offsets = [2, 0], sizes = [1, 32], strides = [1, 1]} : vector<6x32xf32> to vector<1x32xf32>
    %5 = vector.extract_strided_slice %1 {offsets = [3, 0], sizes = [1, 32], strides = [1, 1]} : vector<6x32xf32> to vector<1x32xf32>
    %6 = vector.extract_strided_slice %1 {offsets = [4, 0], sizes = [1, 32], strides = [1, 1]} : vector<6x32xf32> to vector<1x32xf32>
    %7 = vector.extract_strided_slice %1 {offsets = [5, 0], sizes = [1, 32], strides = [1, 1]} : vector<6x32xf32> to vector<1x32xf32>
    %c0_i32 = arith.constant 0 : i32
    %8 = arith.cmpi eq, %arg1, %c0_i32 : i32
    %9 = arith.extui %8 : i1 to i32
    %c0_i32_2 = arith.constant 0 : i32
    %10 = arith.cmpi ne, %9, %c0_i32_2 : i32
    scf.if %10 {
      %c0_56 = arith.constant 0 : index
      %c0_57 = arith.constant 0 : index
      %c0_58 = arith.constant 0 : index
      %145 = vector.load %arg3[%c0_56, %c0_57, %c0_58] : memref<1x16x32xf32, #tpu.memory_space<vmem>>, vector<1x16x32xf32>
      %146 = vector.shape_cast %145 : vector<1x16x32xf32> to vector<16x32xf32>
      %cst_59 = arith.constant dense<0.000000e+00> : vector<16xf32>
      %147 = vector.multi_reduction <add>, %146, %cst_59 [1] : vector<16x32xf32> to vector<16xf32>
      %148 = vector.shape_cast %147 : vector<16xf32> to vector<16x1xf32>
      %cst_60 = arith.constant 3.200000e+01 : f32
      %149 = vector.broadcast %cst_60 : f32 to vector<16x1xf32>
      %150 = arith.divf %148, %149 : vector<16x1xf32>
      %151 = vector.broadcast %150 : vector<16x1xf32> to vector<16x32xf32>
      %152 = arith.subf %146, %151 : vector<16x32xf32>
      %153 = arith.mulf %152, %152 : vector<16x32xf32>
      %cst_61 = arith.constant dense<0.000000e+00> : vector<16xf32>
      %154 = vector.multi_reduction <add>, %153, %cst_61 [1] : vector<16x32xf32> to vector<16xf32>
      %155 = vector.shape_cast %154 : vector<16xf32> to vector<16x1xf32>
      %cst_62 = arith.constant 3.200000e+01 : f32
      %156 = vector.broadcast %cst_62 : f32 to vector<16x1xf32>
      %157 = arith.divf %155, %156 : vector<16x1xf32>
      %158 = vector.broadcast %150 : vector<16x1xf32> to vector<16x32xf32>
      %159 = arith.subf %146, %158 : vector<16x32xf32>
      %cst_63 = arith.constant 9.99999997E-7 : f32
      %160 = vector.broadcast %cst_63 : f32 to vector<16x1xf32>
      %161 = arith.addf %157, %160 : vector<16x1xf32>
      %162 = math.rsqrt %161 : vector<16x1xf32>
      %163 = vector.broadcast %162 : vector<16x1xf32> to vector<16x32xf32>
      %164 = arith.mulf %159, %163 : vector<16x32xf32>
      %cst_64 = arith.constant 1.000000e+00 : f32
      %165 = vector.broadcast %cst_64 : f32 to vector<1x32xf32>
      %166 = arith.addf %4, %165 : vector<1x32xf32>
      %167 = vector.broadcast %166 : vector<1x32xf32> to vector<16x32xf32>
      %168 = arith.mulf %164, %167 : vector<16x32xf32>
      %169 = vector.broadcast %6 : vector<1x32xf32> to vector<16x32xf32>
      %170 = arith.addf %168, %169 : vector<16x32xf32>
      %171 = arith.truncf %170 : vector<16x32xf32> to vector<16x32xbf16>
      %c0_65 = arith.constant 0 : index
      %c0_66 = arith.constant 0 : index
      %172 = vector.load %arg8[%c0_65, %c0_66] : memref<32x64xbf16, #tpu.memory_space<vmem>>, vector<32x64xbf16>
      %cst_67 = arith.constant dense<0.000000e+00> : vector<16x64xf32>
      %173 = tpu.matmul %171, %172, %cst_67 {dimension_numbers = #tpu.dot_dimension_numbers<[1], [0], [0], [1], [0, 0, 1, 1], [], []>} : vector<16x32xbf16>, vector<32x64xbf16>, vector<16x64xf32> -> vector<16x64xf32>
      %c0_68 = arith.constant 0 : index
      %c0_69 = arith.constant 0 : index
      %174 = vector.load %arg9[%c0_68, %c0_69] : memref<1x64xf32, #tpu.memory_space<vmem>>, vector<1x64xf32>
      %175 = vector.broadcast %174 : vector<1x64xf32> to vector<16x64xf32>
      %176 = arith.addf %173, %175 : vector<16x64xf32>
      %177 = vector.extract_strided_slice %176 {offsets = [0, 0], sizes = [8, 32], strides = [1, 1]} : vector<16x64xf32> to vector<8x32xf32>
      %178 = vector.extract_strided_slice %176 {offsets = [0, 32], sizes = [8, 32], strides = [1, 1]} : vector<16x64xf32> to vector<8x32xf32>
      %179 = tpu.transpose %177, [1, 0] : vector<8x32xf32> -> vector<32x8xf32>
      %180 = vector.shape_cast %179 : vector<32x8xf32> to vector<4x8x8xf32>
      %181 = arith.truncf %180 : vector<4x8x8xf32> to vector<4x8x8xbf16>
      %c0_70 = arith.constant 0 : index
      %c0_71 = arith.constant 0 : index
      %c0_72 = arith.constant 0 : index
      %c0_73 = arith.constant 0 : index
      %182 = vector.load %arg17[%c0_70, %c0_71, %c0_72, %c0_73] : memref<2x4x8x8xbf16, #tpu.memory_space<vmem>>, vector<1x4x8x8xbf16>
      %183 = vector.shape_cast %182 : vector<1x4x8x8xbf16> to vector<4x8x8xbf16>
      %184 = vector.shape_cast %181 : vector<4x8x8xbf16> to vector<1x4x8x8xbf16>
      tpu.vector_store %arg17[%c0_70, %c0_71, %c0_72, %c0_73], %184 {strides = array<i32>} : memref<2x4x8x8xbf16, #tpu.memory_space<vmem>>, vector<1x4x8x8xbf16>,
      %185 = vector.shape_cast %178 : vector<8x32xf32> to vector<8x4x8xf32>
      %186 = tpu.transpose %185, [1, 0, 2] : vector<8x4x8xf32> -> vector<4x8x8xf32>
      %187 = arith.truncf %186 : vector<4x8x8xf32> to vector<4x8x8xbf16>
      %c0_74 = arith.constant 0 : index
      %c0_75 = arith.constant 0 : index
      %c0_76 = arith.constant 0 : index
      %c0_77 = arith.constant 0 : index
      %188 = vector.load %arg18[%c0_74, %c0_75, %c0_76, %c0_77] : memref<2x4x8x8xbf16, #tpu.memory_space<vmem>>, vector<1x4x8x8xbf16>
      %189 = vector.shape_cast %188 : vector<1x4x8x8xbf16> to vector<4x8x8xbf16>
      %190 = vector.shape_cast %187 : vector<4x8x8xbf16> to vector<1x4x8x8xbf16>
      tpu.vector_store %arg18[%c0_74, %c0_75, %c0_76, %c0_77], %190 {strides = array<i32>} : memref<2x4x8x8xbf16, #tpu.memory_space<vmem>>, vector<1x4x8x8xbf16>,
      %191 = vector.extract_strided_slice %176 {offsets = [8, 0], sizes = [8, 32], strides = [1, 1]} : vector<16x64xf32> to vector<8x32xf32>
      %192 = vector.extract_strided_slice %176 {offsets = [8, 32], sizes = [8, 32], strides = [1, 1]} : vector<16x64xf32> to vector<8x32xf32>
      %193 = tpu.transpose %191, [1, 0] : vector<8x32xf32> -> vector<32x8xf32>
      %194 = vector.shape_cast %193 : vector<32x8xf32> to vector<4x8x8xf32>
      %195 = arith.truncf %194 : vector<4x8x8xf32> to vector<4x8x8xbf16>
      %c1 = arith.constant 1 : index
      %c0_78 = arith.constant 0 : index
      %c0_79 = arith.constant 0 : index
      %c0_80 = arith.constant 0 : index
      %196 = vector.load %arg17[%c1, %c0_78, %c0_79, %c0_80] : memref<2x4x8x8xbf16, #tpu.memory_space<vmem>>, vector<1x4x8x8xbf16>
      %197 = vector.shape_cast %196 : vector<1x4x8x8xbf16> to vector<4x8x8xbf16>
      %198 = vector.shape_cast %195 : vector<4x8x8xbf16> to vector<1x4x8x8xbf16>
      tpu.vector_store %arg17[%c1, %c0_78, %c0_79, %c0_80], %198 {strides = array<i32>} : memref<2x4x8x8xbf16, #tpu.memory_space<vmem>>, vector<1x4x8x8xbf16>,
      %199 = vector.shape_cast %192 : vector<8x32xf32> to vector<8x4x8xf32>
      %200 = tpu.transpose %199, [1, 0, 2] : vector<8x4x8xf32> -> vector<4x8x8xf32>
      %201 = arith.truncf %200 : vector<4x8x8xf32> to vector<4x8x8xbf16>
      %c1_81 = arith.constant 1 : index
      %c0_82 = arith.constant 0 : index
      %c0_83 = arith.constant 0 : index
      %c0_84 = arith.constant 0 : index
      %202 = vector.load %arg18[%c1_81, %c0_82, %c0_83, %c0_84] : memref<2x4x8x8xbf16, #tpu.memory_space<vmem>>, vector<1x4x8x8xbf16>
      %203 = vector.shape_cast %202 : vector<1x4x8x8xbf16> to vector<4x8x8xbf16>
      %204 = vector.shape_cast %201 : vector<4x8x8xbf16> to vector<1x4x8x8xbf16>
      tpu.vector_store %arg18[%c1_81, %c0_82, %c0_83, %c0_84], %204 {strides = array<i32>} : memref<2x4x8x8xbf16, #tpu.memory_space<vmem>>, vector<1x4x8x8xbf16>,
    } else {
    }
    %c0_3 = arith.constant 0 : index
    %c0_4 = arith.constant 0 : index
    %c0_5 = arith.constant 0 : index
    %11 = vector.load %arg2[%c0_3, %c0_4, %c0_5] : memref<1x8x32xf32, #tpu.memory_space<vmem>>, vector<1x8x32xf32>
    %12 = vector.shape_cast %11 : vector<1x8x32xf32> to vector<8x32xf32>
    %cst = arith.constant dense<0.000000e+00> : vector<8xf32>
    %13 = vector.multi_reduction <add>, %12, %cst [1] : vector<8x32xf32> to vector<8xf32>
    %14 = vector.shape_cast %13 : vector<8xf32> to vector<8x1xf32>
    %cst_6 = arith.constant 3.200000e+01 : f32
    %15 = vector.broadcast %cst_6 : f32 to vector<8x1xf32>
    %16 = arith.divf %14, %15 : vector<8x1xf32>
    %17 = vector.broadcast %16 : vector<8x1xf32> to vector<8x32xf32>
    %18 = arith.subf %12, %17 : vector<8x32xf32>
    %19 = arith.mulf %18, %18 : vector<8x32xf32>
    %cst_7 = arith.constant dense<0.000000e+00> : vector<8xf32>
    %20 = vector.multi_reduction <add>, %19, %cst_7 [1] : vector<8x32xf32> to vector<8xf32>
    %21 = vector.shape_cast %20 : vector<8xf32> to vector<8x1xf32>
    %cst_8 = arith.constant 3.200000e+01 : f32
    %22 = vector.broadcast %cst_8 : f32 to vector<8x1xf32>
    %23 = arith.divf %21, %22 : vector<8x1xf32>
    %24 = vector.broadcast %16 : vector<8x1xf32> to vector<8x32xf32>
    %25 = arith.subf %12, %24 : vector<8x32xf32>
    %cst_9 = arith.constant 9.99999997E-7 : f32
    %26 = vector.broadcast %cst_9 : f32 to vector<8x1xf32>
    %27 = arith.addf %23, %26 : vector<8x1xf32>
    %28 = math.rsqrt %27 : vector<8x1xf32>
    %29 = vector.broadcast %28 : vector<8x1xf32> to vector<8x32xf32>
    %30 = arith.mulf %25, %29 : vector<8x32xf32>
    %cst_10 = arith.constant 1.000000e+00 : f32
    %31 = vector.broadcast %cst_10 : f32 to vector<1x32xf32>
    %32 = arith.addf %4, %31 : vector<1x32xf32>
    %33 = vector.broadcast %32 : vector<1x32xf32> to vector<8x32xf32>
    %34 = arith.mulf %30, %33 : vector<8x32xf32>
    %35 = vector.broadcast %6 : vector<1x32xf32> to vector<8x32xf32>
    %36 = arith.addf %34, %35 : vector<8x32xf32>
    %37 = arith.truncf %36 : vector<8x32xf32> to vector<8x32xbf16>
    %c0_11 = arith.constant 0 : index
    %c0_12 = arith.constant 0 : index
    %38 = vector.load %arg6[%c0_11, %c0_12] : memref<32x32xbf16, #tpu.memory_space<vmem>>, vector<32x32xbf16>
    %cst_13 = arith.constant dense<0.000000e+00> : vector<8x32xf32>
    %39 = tpu.matmul %37, %38, %cst_13 {dimension_numbers = #tpu.dot_dimension_numbers<[1], [0], [0], [1], [0, 0, 1, 1], [], []>} : vector<8x32xbf16>, vector<32x32xbf16>, vector<8x32xf32> -> vector<8x32xf32>
    %c0_14 = arith.constant 0 : index
    %c0_15 = arith.constant 0 : index
    %40 = vector.load %arg7[%c0_14, %c0_15] : memref<1x32xf32, #tpu.memory_space<vmem>>, vector<1x32xf32>
    %41 = vector.broadcast %40 : vector<1x32xf32> to vector<8x32xf32>
    %42 = arith.addf %39, %41 : vector<8x32xf32>
    %43 = vector.shape_cast %42 : vector<8x32xf32> to vector<8x4x8xf32>
    %44 = tpu.transpose %43, [1, 0, 2] : vector<8x4x8xf32> -> vector<4x8x8xf32>
    %45 = arith.truncf %44 : vector<4x8x8xf32> to vector<4x8x8xbf16>
    %cst_16 = arith.constant -1.000000e+30 : f32
    %46 = vector.broadcast %cst_16 : f32 to vector<4x8x1xf32>
    %cst_17 = arith.constant 0.000000e+00 : f32
    %47 = vector.broadcast %cst_17 : f32 to vector<4x8x1xf32>
    %cst_18 = arith.constant 0.000000e+00 : f32
    %48 = vector.broadcast %cst_18 : f32 to vector<4x8x8xf32>
    %c0_i32_19 = arith.constant 0 : i32
    %c2_i32 = arith.constant 2 : i32
    %49 = arith.addi %c0_i32_19, %c2_i32 : i32
    %c1_i32 = arith.constant 1 : i32
    %50:3 = scf.for %arg20 = %c0_i32_19 to %49 step %c1_i32 iter_args(%arg21 = %46, %arg22 = %47, %arg23 = %48) -> (vector<4x8x1xf32>, vector<4x8x1xf32>, vector<4x8x8xf32>)  : i32 {
      %145 = arith.index_cast %arg20 : i32 to index
      %c0_56 = arith.constant 0 : index
      %c0_57 = arith.constant 0 : index
      %c0_58 = arith.constant 0 : index
      %146 = vector.load %arg17[%145, %c0_56, %c0_57, %c0_58] : memref<2x4x8x8xbf16, #tpu.memory_space<vmem>>, vector<1x4x8x8xbf16>
      %147 = vector.shape_cast %146 : vector<1x4x8x8xbf16> to vector<4x8x8xbf16>
      "tpu.trace_start"() <{level = 10 : i32, message = "hqd,hdk->hqk"}> : () -> ()
      %cst_59 = arith.constant dense<0.000000e+00> : vector<4x8x8xf32>
      %148 = tpu.matmul %45, %147, %cst_59 {dimension_numbers = #tpu.dot_dimension_numbers<[2], [1], [1], [2], [0, 0, 0, 1, 1, 2], [0], [0]>} : vector<4x8x8xbf16>, vector<4x8x8xbf16>, vector<4x8x8xf32> -> vector<4x8x8xf32>
      "tpu.trace_stop"() : () -> ()
      %149 = arith.index_cast %arg20 : i32 to index
      %c0_60 = arith.constant 0 : index
      %c0_61 = arith.constant 0 : index
      %150 = vector.load %arg5[%149, %c0_60, %c0_61] : memref<2x8x8xf32, #tpu.memory_space<vmem>>, vector<1x8x8xf32>
      %151 = vector.shape_cast %150 : vector<1x8x8xf32> to vector<8x8xf32>
      %152 = vector.shape_cast %151 : vector<8x8xf32> to vector<1x8x8xf32>
      %153 = vector.broadcast %152 : vector<1x8x8xf32> to vector<4x8x8xf32>
      %154 = arith.addf %148, %153 : vector<4x8x8xf32>
      %cst_62 = arith.constant dense<0xFF800000> : vector<4x8xf32>
      %155 = vector.multi_reduction <maximumf>, %154, %cst_62 [2] : vector<4x8x8xf32> to vector<4x8xf32>
      %156 = vector.shape_cast %155 : vector<4x8xf32> to vector<4x8x1xf32>
      %157 = arith.maximumf %arg21, %156 : vector<4x8x1xf32>
      %158 = arith.subf %arg21, %157 : vector<4x8x1xf32>
      %159 = math.exp %158 : vector<4x8x1xf32>
      %160 = vector.broadcast %157 : vector<4x8x1xf32> to vector<4x8x8xf32>
      %161 = arith.subf %154, %160 : vector<4x8x8xf32>
      %162 = math.exp %161 : vector<4x8x8xf32>
      %163 = arith.mulf %159, %arg22 : vector<4x8x1xf32>
      %cst_63 = arith.constant dense<0.000000e+00> : vector<4x8xf32>
      %164 = vector.multi_reduction <add>, %162, %cst_63 [2] : vector<4x8x8xf32> to vector<4x8xf32>
      %165 = vector.shape_cast %164 : vector<4x8xf32> to vector<4x8x1xf32>
      %166 = arith.addf %163, %165 : vector<4x8x1xf32>
      %167 = vector.broadcast %159 : vector<4x8x1xf32> to vector<4x8x8xf32>
      %168 = arith.mulf %167, %arg23 : vector<4x8x8xf32>
      %169 = arith.truncf %162 : vector<4x8x8xf32> to vector<4x8x8xbf16>
      %170 = arith.index_cast %arg20 : i32 to index
      %c0_64 = arith.constant 0 : index
      %c0_65 = arith.constant 0 : index
      %c0_66 = arith.constant 0 : index
      %171 = vector.load %arg18[%170, %c0_64, %c0_65, %c0_66] : memref<2x4x8x8xbf16, #tpu.memory_space<vmem>>, vector<1x4x8x8xbf16>
      %172 = vector.shape_cast %171 : vector<1x4x8x8xbf16> to vector<4x8x8xbf16>
      "tpu.trace_start"() <{level = 10 : i32, message = "hqk,hkd->hqd"}> : () -> ()
      %cst_67 = arith.constant dense<0.000000e+00> : vector<4x8x8xf32>
      %173 = tpu.matmul %169, %172, %cst_67 {dimension_numbers = #tpu.dot_dimension_numbers<[2], [1], [1], [2], [0, 0, 0, 1, 1, 2], [0], [0]>} : vector<4x8x8xbf16>, vector<4x8x8xbf16>, vector<4x8x8xf32> -> vector<4x8x8xf32>
      "tpu.trace_stop"() : () -> ()
      %174 = arith.addf %168, %173 : vector<4x8x8xf32>
      scf.yield %157, %166, %174 : vector<4x8x1xf32>, vector<4x8x1xf32>, vector<4x8x8xf32>
    }
    %c2_i32_20 = arith.constant 2 : i32
    %51 = tpu.reciprocal %50#1 {approx = true} : vector<4x8x1xf32> -> vector<4x8x1xf32>
    %52 = vector.extract_strided_slice %50#2 {offsets = [0, 0, 0], sizes = [1, 8, 8], strides = [1, 1, 1]} : vector<4x8x8xf32> to vector<1x8x8xf32>
    %53 = vector.shape_cast %52 : vector<1x8x8xf32> to vector<8x8xf32>
    %54 = vector.extract_strided_slice %51 {offsets = [0, 0, 0], sizes = [1, 8, 1], strides = [1, 1, 1]} : vector<4x8x1xf32> to vector<1x8x1xf32>
    %55 = vector.shape_cast %54 : vector<1x8x1xf32> to vector<8x1xf32>
    %56 = vector.broadcast %55 : vector<8x1xf32> to vector<8x8xf32>
    %57 = arith.mulf %53, %56 : vector<8x8xf32>
    %c0_21 = arith.constant 0 : index
    %c0_22 = arith.constant 0 : index
    %58 = vector.load %arg19[%c0_21, %c0_22] : memref<8x32xf32, #tpu.memory_space<vmem>>, vector<8x8xf32>
    tpu.vector_store %arg19[%c0_21, %c0_22], %57 {strides = array<i32>} : memref<8x32xf32, #tpu.memory_space<vmem>>, vector<8x8xf32>,
    %59 = vector.extract_strided_slice %50#2 {offsets = [1, 0, 0], sizes = [1, 8, 8], strides = [1, 1, 1]} : vector<4x8x8xf32> to vector<1x8x8xf32>
    %60 = vector.shape_cast %59 : vector<1x8x8xf32> to vector<8x8xf32>
    %61 = vector.extract_strided_slice %51 {offsets = [1, 0, 0], sizes = [1, 8, 1], strides = [1, 1, 1]} : vector<4x8x1xf32> to vector<1x8x1xf32>
    %62 = vector.shape_cast %61 : vector<1x8x1xf32> to vector<8x1xf32>
    %63 = vector.broadcast %62 : vector<8x1xf32> to vector<8x8xf32>
    %64 = arith.mulf %60, %63 : vector<8x8xf32>
    %c0_23 = arith.constant 0 : index
    %c8 = arith.constant 8 : index
    %65 = vector.load %arg19[%c0_23, %c8] : memref<8x32xf32, #tpu.memory_space<vmem>>, vector<8x8xf32>
    tpu.vector_store %arg19[%c0_23, %c8], %64 {strides = array<i32>} : memref<8x32xf32, #tpu.memory_space<vmem>>, vector<8x8xf32>,
    %66 = vector.extract_strided_slice %50#2 {offsets = [2, 0, 0], sizes = [1, 8, 8], strides = [1, 1, 1]} : vector<4x8x8xf32> to vector<1x8x8xf32>
    %67 = vector.shape_cast %66 : vector<1x8x8xf32> to vector<8x8xf32>
    %68 = vector.extract_strided_slice %51 {offsets = [2, 0, 0], sizes = [1, 8, 1], strides = [1, 1, 1]} : vector<4x8x1xf32> to vector<1x8x1xf32>
    %69 = vector.shape_cast %68 : vector<1x8x1xf32> to vector<8x1xf32>
    %70 = vector.broadcast %69 : vector<8x1xf32> to vector<8x8xf32>
    %71 = arith.mulf %67, %70 : vector<8x8xf32>
    %c0_24 = arith.constant 0 : index
    %c16 = arith.constant 16 : index
    %72 = vector.load %arg19[%c0_24, %c16] : memref<8x32xf32, #tpu.memory_space<vmem>>, vector<8x8xf32>
    tpu.vector_store %arg19[%c0_24, %c16], %71 {strides = array<i32>} : memref<8x32xf32, #tpu.memory_space<vmem>>, vector<8x8xf32>,
    %73 = vector.extract_strided_slice %50#2 {offsets = [3, 0, 0], sizes = [1, 8, 8], strides = [1, 1, 1]} : vector<4x8x8xf32> to vector<1x8x8xf32>
    %74 = vector.shape_cast %73 : vector<1x8x8xf32> to vector<8x8xf32>
    %75 = vector.extract_strided_slice %51 {offsets = [3, 0, 0], sizes = [1, 8, 1], strides = [1, 1, 1]} : vector<4x8x1xf32> to vector<1x8x1xf32>
    %76 = vector.shape_cast %75 : vector<1x8x1xf32> to vector<8x1xf32>
    %77 = vector.broadcast %76 : vector<8x1xf32> to vector<8x8xf32>
    %78 = arith.mulf %74, %77 : vector<8x8xf32>
    %c0_25 = arith.constant 0 : index
    %c24 = arith.constant 24 : index
    %79 = vector.load %arg19[%c0_25, %c24] : memref<8x32xf32, #tpu.memory_space<vmem>>, vector<8x8xf32>
    tpu.vector_store %arg19[%c0_25, %c24], %78 {strides = array<i32>} : memref<8x32xf32, #tpu.memory_space<vmem>>, vector<8x8xf32>,
    %c0_26 = arith.constant 0 : index
    %c0_27 = arith.constant 0 : index
    %80 = vector.load %arg19[%c0_26, %c0_27] : memref<8x32xf32, #tpu.memory_space<vmem>>, vector<8x32xf32>
    %81 = arith.truncf %80 : vector<8x32xf32> to vector<8x32xbf16>
    %c0_28 = arith.constant 0 : index
    %c0_29 = arith.constant 0 : index
    %82 = vector.load %arg10[%c0_28, %c0_29] : memref<32x32xbf16, #tpu.memory_space<vmem>>, vector<32x32xbf16>
    %cst_30 = arith.constant dense<0.000000e+00> : vector<8x32xf32>
    %83 = tpu.matmul %81, %82, %cst_30 {dimension_numbers = #tpu.dot_dimension_numbers<[1], [0], [0], [1], [0, 0, 1, 1], [], []>} : vector<8x32xbf16>, vector<32x32xbf16>, vector<8x32xf32> -> vector<8x32xf32>
    %c0_31 = arith.constant 0 : index
    %c0_32 = arith.constant 0 : index
    %84 = vector.load %arg11[%c0_31, %c0_32] : memref<1x32xf32, #tpu.memory_space<vmem>>, vector<1x32xf32>
    %85 = vector.broadcast %84 : vector<1x32xf32> to vector<8x32xf32>
    %86 = arith.addf %83, %85 : vector<8x32xf32>
    %87 = vector.broadcast %2 : vector<1x32xf32> to vector<8x32xf32>
    %88 = arith.mulf %86, %87 : vector<8x32xf32>
    %89 = arith.addf %12, %88 : vector<8x32xf32>
    %cst_33 = arith.constant dense<0.000000e+00> : vector<8xf32>
    %90 = vector.multi_reduction <add>, %89, %cst_33 [1] : vector<8x32xf32> to vector<8xf32>
    %91 = vector.shape_cast %90 : vector<8xf32> to vector<8x1xf32>
    %cst_34 = arith.constant 3.200000e+01 : f32
    %92 = vector.broadcast %cst_34 : f32 to vector<8x1xf32>
    %93 = arith.divf %91, %92 : vector<8x1xf32>
    %94 = vector.broadcast %93 : vector<8x1xf32> to vector<8x32xf32>
    %95 = arith.subf %89, %94 : vector<8x32xf32>
    %96 = arith.mulf %95, %95 : vector<8x32xf32>
    %cst_35 = arith.constant dense<0.000000e+00> : vector<8xf32>
    %97 = vector.multi_reduction <add>, %96, %cst_35 [1] : vector<8x32xf32> to vector<8xf32>
    %98 = vector.shape_cast %97 : vector<8xf32> to vector<8x1xf32>
    %cst_36 = arith.constant 3.200000e+01 : f32
    %99 = vector.broadcast %cst_36 : f32 to vector<8x1xf32>
    %100 = arith.divf %98, %99 : vector<8x1xf32>
    %101 = vector.broadcast %93 : vector<8x1xf32> to vector<8x32xf32>
    %102 = arith.subf %89, %101 : vector<8x32xf32>
    %cst_37 = arith.constant 9.99999997E-7 : f32
    %103 = vector.broadcast %cst_37 : f32 to vector<8x1xf32>
    %104 = arith.addf %100, %103 : vector<8x1xf32>
    %105 = math.rsqrt %104 : vector<8x1xf32>
    %106 = vector.broadcast %105 : vector<8x1xf32> to vector<8x32xf32>
    %107 = arith.mulf %102, %106 : vector<8x32xf32>
    %cst_38 = arith.constant 1.000000e+00 : f32
    %108 = vector.broadcast %cst_38 : f32 to vector<1x32xf32>
    %109 = arith.addf %5, %108 : vector<1x32xf32>
    %110 = vector.broadcast %109 : vector<1x32xf32> to vector<8x32xf32>
    %111 = arith.mulf %107, %110 : vector<8x32xf32>
    %112 = vector.broadcast %7 : vector<1x32xf32> to vector<8x32xf32>
    %113 = arith.addf %111, %112 : vector<8x32xf32>
    %114 = arith.truncf %113 : vector<8x32xf32> to vector<8x32xbf16>
    %c0_39 = arith.constant 0 : index
    %c0_40 = arith.constant 0 : index
    %115 = vector.load %arg12[%c0_39, %c0_40] : memref<32x128xbf16, #tpu.memory_space<vmem>>, vector<32x128xbf16>
    %cst_41 = arith.constant dense<0.000000e+00> : vector<8x128xf32>
    %116 = tpu.matmul %114, %115, %cst_41 {dimension_numbers = #tpu.dot_dimension_numbers<[1], [0], [0], [1], [0, 0, 1, 1], [], []>} : vector<8x32xbf16>, vector<32x128xbf16>, vector<8x128xf32> -> vector<8x128xf32>
    %c0_42 = arith.constant 0 : index
    %c0_43 = arith.constant 0 : index
    %117 = vector.load %arg13[%c0_42, %c0_43] : memref<1x128xf32, #tpu.memory_space<vmem>>, vector<1x128xf32>
    %118 = vector.broadcast %117 : vector<1x128xf32> to vector<8x128xf32>
    %119 = arith.addf %116, %118 : vector<8x128xf32>
    %cst_44 = arith.constant 5.000000e-01 : f32
    %120 = vector.broadcast %cst_44 : f32 to vector<8x128xf32>
    %121 = arith.mulf %120, %119 : vector<8x128xf32>
    %cst_45 = arith.constant 4.471500e-02 : f32
    %122 = vector.broadcast %cst_45 : f32 to vector<8x128xf32>
    %123 = arith.mulf %122, %119 : vector<8x128xf32>
    %124 = arith.mulf %123, %119 : vector<8x128xf32>
    %125 = arith.mulf %124, %119 : vector<8x128xf32>
    %126 = arith.addf %119, %125 : vector<8x128xf32>
    %cst_46 = arith.constant 0.797884583 : f32
    %127 = vector.broadcast %cst_46 : f32 to vector<8x128xf32>
    %128 = arith.mulf %127, %126 : vector<8x128xf32>
    %129 = math.tanh %128 : vector<8x128xf32>
    %cst_47 = arith.constant 1.000000e+00 : f32
    %130 = vector.broadcast %cst_47 : f32 to vector<8x128xf32>
    %131 = arith.addf %130, %129 : vector<8x128xf32>
    %132 = arith.mulf %121, %131 : vector<8x128xf32>
    %133 = arith.truncf %132 : vector<8x128xf32> to vector<8x128xbf16>
    %c0_48 = arith.constant 0 : index
    %c0_49 = arith.constant 0 : index
    %134 = vector.load %arg14[%c0_48, %c0_49] : memref<128x32xbf16, #tpu.memory_space<vmem>>, vector<128x32xbf16>
    %cst_50 = arith.constant dense<0.000000e+00> : vector<8x32xf32>
    %135 = tpu.matmul %133, %134, %cst_50 {dimension_numbers = #tpu.dot_dimension_numbers<[1], [0], [0], [1], [0, 0, 1, 1], [], []>} : vector<8x128xbf16>, vector<128x32xbf16>, vector<8x32xf32> -> vector<8x32xf32>
    %c0_51 = arith.constant 0 : index
    %c0_52 = arith.constant 0 : index
    %136 = vector.load %arg15[%c0_51, %c0_52] : memref<1x32xf32, #tpu.memory_space<vmem>>, vector<1x32xf32>
    %137 = vector.broadcast %136 : vector<1x32xf32> to vector<8x32xf32>
    %138 = arith.addf %135, %137 : vector<8x32xf32>
    %139 = vector.broadcast %3 : vector<1x32xf32> to vector<8x32xf32>
    %140 = arith.mulf %138, %139 : vector<8x32xf32>
    %141 = arith.addf %89, %140 : vector<8x32xf32>
    %c0_53 = arith.constant 0 : index
    %c0_54 = arith.constant 0 : index
    %c0_55 = arith.constant 0 : index
    %142 = vector.load %arg16[%c0_53, %c0_54, %c0_55] : memref<1x8x32xf32, #tpu.memory_space<vmem>>, vector<1x8x32xf32>
    %143 = vector.shape_cast %142 : vector<1x8x32xf32> to vector<8x32xf32>
    %144 = vector.shape_cast %141 : vector<8x32xf32> to vector<1x8x32xf32>
    tpu.vector_store %arg16[%c0_53, %c0_54, %c0_55], %144 {strides = array<i32>} : memref<1x8x32xf32, #tpu.memory_space<vmem>>, vector<1x8x32xf32>,
    return
  }
  func.func @transform_0(%arg0: i32, %arg1: i32) -> (i32, i32, i32) {
    %c0_i32 = arith.constant 0 : i32
    %c0_i32_0 = arith.constant 0 : i32
    return %arg0, %arg1, %c0_i32 : i32, i32, i32
  }
  func.func @transform_1(%arg0: i32, %arg1: i32) -> (i32, i32, i32) {
    %c0_i32 = arith.constant 0 : i32
    %c0_i32_0 = arith.constant 0 : i32
    %c0_i32_1 = arith.constant 0 : i32
    return %arg0, %c0_i32, %c0_i32_0 : i32, i32, i32
  }
  func.func @transform_2(%arg0: i32, %arg1: i32) -> (i32, i32, i32) {
    %c0_i32 = arith.constant 0 : i32
    %c0_i32_0 = arith.constant 0 : i32
    %c0_i32_1 = arith.constant 0 : i32
    return %arg0, %c0_i32, %c0_i32_0 : i32, i32, i32
  }
  func.func @transform_3(%arg0: i32, %arg1: i32) -> (i32, i32, i32) {
    %c0_i32 = arith.constant 0 : i32
    %c0_i32_0 = arith.constant 0 : i32
    %c0_i32_1 = arith.constant 0 : i32
    return %arg1, %c0_i32, %c0_i32_0 : i32, i32, i32
  }
  func.func @transform_4(%arg0: i32, %arg1: i32) -> (i32, i32) {
    %c0_i32 = arith.constant 0 : i32
    %c0_i32_0 = arith.constant 0 : i32
    %c0_i32_1 = arith.constant 0 : i32
    return %c0_i32, %c0_i32_0 : i32, i32
  }
  func.func @transform_5(%arg0: i32, %arg1: i32) -> (i32, i32) {
    %c0_i32 = arith.constant 0 : i32
    %c0_i32_0 = arith.constant 0 : i32
    %c0_i32_1 = arith.constant 0 : i32
    return %c0_i32, %c0_i32_0 : i32, i32
  }
  func.func @transform_6(%arg0: i32, %arg1: i32) -> (i32, i32) {
    %c0_i32 = arith.constant 0 : i32
    %c0_i32_0 = arith.constant 0 : i32
    %c0_i32_1 = arith.constant 0 : i32
    return %c0_i32, %c0_i32_0 : i32, i32
  }
  func.func @transform_7(%arg0: i32, %arg1: i32) -> (i32, i32) {
    %c0_i32 = arith.constant 0 : i32
    %c0_i32_0 = arith.constant 0 : i32
    %c0_i32_1 = arith.constant 0 : i32
    return %c0_i32, %c0_i32_0 : i32, i32
  }
  func.func @transform_8(%arg0: i32, %arg1: i32) -> (i32, i32) {
    %c0_i32 = arith.constant 0 : i32
    %c0_i32_0 = arith.constant 0 : i32
    %c0_i32_1 = arith.constant 0 : i32
    return %c0_i32, %c0_i32_0 : i32, i32
  }
  func.func @transform_9(%arg0: i32, %arg1: i32) -> (i32, i32) {
    %c0_i32 = arith.constant 0 : i32
    %c0_i32_0 = arith.constant 0 : i32
    %c0_i32_1 = arith.constant 0 : i32
    return %c0_i32, %c0_i32_0 : i32, i32
  }
  func.func @transform_10(%arg0: i32, %arg1: i32) -> (i32, i32) {
    %c0_i32 = arith.constant 0 : i32
    %c0_i32_0 = arith.constant 0 : i32
    %c0_i32_1 = arith.constant 0 : i32
    return %c0_i32, %c0_i32_0 : i32, i32
  }
  func.func @transform_11(%arg0: i32, %arg1: i32) -> (i32, i32) {
    %c0_i32 = arith.constant 0 : i32
    %c0_i32_0 = arith.constant 0 : i32
    %c0_i32_1 = arith.constant 0 : i32
    return %c0_i32, %c0_i32_0 : i32, i32
  }
  func.func @transform_12(%arg0: i32, %arg1: i32) -> (i32, i32) {
    %c0_i32 = arith.constant 0 : i32
    %c0_i32_0 = arith.constant 0 : i32
    %c0_i32_1 = arith.constant 0 : i32
    return %c0_i32, %c0_i32_0 : i32, i32
  }
  func.func @transform_13(%arg0: i32, %arg1: i32) -> (i32, i32) {
    %c0_i32 = arith.constant 0 : i32
    %c0_i32_0 = arith.constant 0 : i32
    %c0_i32_1 = arith.constant 0 : i32
    return %c0_i32, %c0_i32_0 : i32, i32
  }
  func.func @transform_14(%arg0: i32, %arg1: i32) -> (i32, i32, i32) {
    %c0_i32 = arith.constant 0 : i32
    %c0_i32_0 = arith.constant 0 : i32
    return %arg0, %arg1, %c0_i32 : i32, i32, i32
  }
}

</mosaic_0001>

<llo_original>
// kernel: tpu_custom_call.1
$region0: #{tpu_custom_call.1}
  #allocation0 [shape = 'u32[]', space=smem, size = 0x4, offset = 0x4, fixed_abs, tag = 'smem constant byte address 0x4 - core index']
  #allocation1 [shape = 'u32[144,128]{1,0:T(1,128)}', space=vmem, size = 0x12000, scoped, tag = 'internal scratch']
  %s0 = inlined_call_operand.hbm [shape: f32[8,128], index: 0, kind: input, shape index: {}]
  %s1 = inlined_call_operand.hbm [shape: f32[8,128], index: 1, kind: output, shape index: {}]
  %s2 = sld [smem:[#allocation0]]
  $region41: #{tpu_custom_call.1} parent=0
    _
  %s4 = ssub.s32 1, %s2
  %s5 = scalar_select 0, %s4, %s2
  $region1: #{tpu_custom_call.1} parent=0
    #allocation2 [shape = 'u8[4096]{0}', space=vmem, size = 0x1000, scoped, tag = 'input window, operand 0, single buffered']
    #allocation3 [shape = 's32[2]{0}', space=sflag, size = 0x8, scoped, tag = 'scoped memory for tpu_custom_call.1']
    #allocation4 [shape = 's32[2]{0}', space=sflag, size = 0x8, scoped, tag = 'scoped memory for tpu_custom_call.1']
    #allocation5 [shape = 'u8[4096]{0}', space=vmem, size = 0x1000, scoped, tag = 'output window, operand 0, single buffered']
    %6 = vsyncpa [#allocation3], 0
    %7 = vsyncpa [#allocation4], 0
    loop: start=0, step=1, limit=4
    $region2: #{tpu_custom_call.1} parent=1 // loop_pre_header
      _
    $region3: #{tpu_custom_call.1} parent=1 // loop_header
      %s9 = sphi 0, %s13
      %p10 = scmp.ge.s32.totalorder %s9, 4
      %s17 = sphi 0, %s17
      %s19 = sphi 0, %s17
      %s20 = sphi 0, %s19
      %s34 = sphi 0, %s20
      %s38 = sphi 0, %s38
      %s40 = sphi 0, %s38
      %s41 = sphi 0, %s40
      %s55 = sphi 0, %s41
    $region4: #{tpu_custom_call.1} parent=1 // loop_header_branch
      %12 = sbr.rel (%p10) target = $region8
    $region5: #{tpu_custom_call.1} parent=1 // loop_body
      %s14 = ssub.s32 %s9, 1
      %s15 = ssub.s32 %s9, 2
      %s16 = sadd.s32 %s9, 1
      %s18 = sadd.s32 %s17, 1
      %p21 = scmp.eq.s32.totalorder %s9, 1
      %p22 = scmp.ne.s32.totalorder %s17, %s19
      %p23 = scmp.eq.s32.totalorder %s9, 0
      %p24 = por %p22, %p23
      %p25 = scmp.ne.s32.totalorder %s17, %s19
      %p26 = scmp.eq.s32.totalorder %s14, 1
      %p27 = por %p25, %p26
      %p28 = scmp.ne.s32.totalorder %s19, %s20
      %p29 = scmp.eq.s32.totalorder %s14, 0
      %p30 = por %p28, %p29
      %p31 = scmp.ne.s32.totalorder %s19, %s20
      %p32 = scmp.eq.s32.totalorder %s15, 1
      %p33 = por %p31, %p32
      %p35 = scmp.ne.s32.totalorder %s20, %s34
      %p36 = scmp.eq.s32.totalorder %s15, 0
      %p37 = por %p35, %p36
      %s39 = sadd.s32 %s38, 1
      %p42 = scmp.eq.s32.totalorder %s9, 1
      %p43 = scmp.ne.s32.totalorder %s38, %s40
      %p44 = scmp.eq.s32.totalorder %s9, 0
      %p45 = por %p43, %p44
      %p46 = scmp.ne.s32.totalorder %s38, %s40
      %p47 = scmp.eq.s32.totalorder %s14, 1
      %p48 = por %p46, %p47
      %p49 = scmp.ne.s32.totalorder %s40, %s41
      %p50 = scmp.eq.s32.totalorder %s14, 0
      %p51 = por %p49, %p50
      %p52 = scmp.ne.s32.totalorder %s40, %s41
      %p53 = scmp.eq.s32.totalorder %s15, 1
      %p54 = por %p52, %p53
      %p56 = scmp.ne.s32.totalorder %s41, %s55
      %p57 = scmp.eq.s32.totalorder %s15, 0
      %p58 = por %p56, %p57
      %p59 = scmp.le.s32.totalorder 1, %s9
      %p60 = scmp.lt.s32.totalorder %s9, 3
      %p61 = pnand %p59, %p60
      %p62 = pneg %p61
      // Predicated region
      $region9: #{tpu_custom_call.1} parent=5 // pred_check
        _
      $region10: #{tpu_custom_call.1} parent=5 // pred_check_branch
        %64 = sbr.rel (%p61) target = $region12
      $region11: #{tpu_custom_call.1} parent=5 // pred_region
        %s65 = ssub.s32 %s9, 1
        // Predicated region
        $region13: #{tpu_custom_call.1} parent=11 // pred_check
          %p66 = pneg %p30
        $region14: #{tpu_custom_call.1} parent=11 // pred_check_branch
          %68 = sbr.rel (%p66) target = $region16
        $region15: #{tpu_custom_call.1} parent=11 // pred_region
          %s70 = ssub.s32 128, 128
          %71 = vsyncadd [#allocation3], %s70
          %s73 = sshll.u32 [#allocation2], 4
          %s74 = int_to_ptr.vmem [resolvable:$true] %s73
          %76 = dma.hbm_to_vmem [thread:$0]  %s0, 128, %s74, [#allocation3]
        $region16: #{tpu_custom_call.1} parent=11 // pred_fallthru
          _
      $region12: #{tpu_custom_call.1} parent=5 // pred_fallthru
        _
      %p77 = scmp.lt.s32.totalorder %s9, 2
      // Predicated region
      $region17: #{tpu_custom_call.1} parent=5 // pred_check
        %p78 = pneg %p77
      $region18: #{tpu_custom_call.1} parent=5 // pred_check_branch
        %80 = sbr.rel (%p78) target = $region20
      $region19: #{tpu_custom_call.1} parent=5 // pred_region
        _
      $region20: #{tpu_custom_call.1} parent=5 // pred_fallthru
        _
      %p81 = scmp.le.s32.totalorder 1, %s9
      %p82 = scmp.lt.s32.totalorder %s9, 3
      %p83 = pnand %p81, %p82
      %p84 = pneg %p83
      // Predicated region
      $region21: #{tpu_custom_call.1} parent=5 // pred_check
        _
      $region22: #{tpu_custom_call.1} parent=5 // pred_check_branch
        %86 = sbr.rel (%p83) target = $region24
      $region23: #{tpu_custom_call.1} parent=5 // pred_region
        %s87 = ssub.s32 %s9, 1
        // Predicated region
        $region25: #{tpu_custom_call.1} parent=23 // pred_check
          %p88 = pneg %p30
        $region26: #{tpu_custom_call.1} parent=23 // pred_check_branch
          %90 = sbr.rel (%p88) target = $region28
        $region27: #{tpu_custom_call.1} parent=23 // pred_region
          %91 = dma.done [#allocation3], 128
        $region28: #{tpu_custom_call.1} parent=23 // pred_fallthru
          _
        %p92 = pneg %p30
        %p93 = pneg %p27
        %p94 = pneg %p51
        %p95 = pneg %p48
        %v96 = vld [vmem:[#allocation2] sm:$0xff]
        %97 = vst [vmem:[#allocation5] sm:$0xff] %v96
        // Predicated region
        $region29: #{tpu_custom_call.1} parent=23 // pred_check
          %p98 = pneg %p48
        $region30: #{tpu_custom_call.1} parent=23 // pred_check_branch
          %100 = sbr.rel (%p98) target = $region32
        $region31: #{tpu_custom_call.1} parent=23 // pred_region
          %s102 = ssub.s32 128, 128
          %103 = vsyncadd [#allocation4], %s102
          %s105 = sshll.u32 [#allocation5], 4
          %s106 = int_to_ptr.vmem [resolvable:$true] %s105
          %108 = dma.vmem_to_hbm [thread:$0]  %s106, 128, %s1, [#allocation4]
        $region32: #{tpu_custom_call.1} parent=23 // pred_fallthru
          _
        // Predicated region
        $region33: #{tpu_custom_call.1} parent=23 // pred_check
          %p109 = pneg %p48
        $region34: #{tpu_custom_call.1} parent=23 // pred_check_branch
          %111 = sbr.rel (%p109) target = $region36
        $region35: #{tpu_custom_call.1} parent=23 // pred_region
          %112 = dma.done [#allocation4], 128
        $region36: #{tpu_custom_call.1} parent=23 // pred_fallthru
          _
      $region24: #{tpu_custom_call.1} parent=5 // pred_fallthru
        _
      %p113 = scmp.le.s32.totalorder 2, %s9
      // Predicated region
      $region37: #{tpu_custom_call.1} parent=5 // pred_check
        %p114 = pneg %p113
      $region38: #{tpu_custom_call.1} parent=5 // pred_check_branch
        %116 = sbr.rel (%p114) target = $region40
      $region39: #{tpu_custom_call.1} parent=5 // pred_region
        %s117 = ssub.s32 %s9, 2
      $region40: #{tpu_custom_call.1} parent=5 // pred_fallthru
        _
    $region6: #{tpu_custom_call.1} parent=1 // loop_footer
      %s13 = sadd.s32 1, %s9
    $region7: #{tpu_custom_call.1} parent=1 // loop_footer_branch
      %8 = sbr.rel target = $region3
    $region8: #{tpu_custom_call.1} parent=1 // loop_exit
      _
    %118 = vsyncpa [#allocation3], 1
    %s119 = scalar_lea.sflag [#allocation3], 1
    %120 = vsyncpa %s119, 1
    %121 = vsyncpa [#allocation4], 1
    %s122 = scalar_lea.sflag [#allocation4], 1
    %123 = vsyncpa %s122, 1

// kernel: tpu_custom_call.1
$region0: #{tpu_custom_call.1}
  #allocation0 [shape = 'u32[]', space=smem, size = 0x4, offset = 0x4, fixed_abs, tag = 'smem constant byte address 0x4 - core index']
  #allocation1 [shape = 'u32[144,128]{1,0:T(1,128)}', space=vmem, size = 0x12000, scoped, tag = 'internal scratch']
  #allocation2 [shape = 'bf16[2,4,8,8]{3,2,1,0:T(8,128)(2,1)}', space=vmem, size = 0x4000, scoped, tag = 'scratch operand']
  #allocation3 [shape = 'bf16[2,4,8,8]{3,2,1,0:T(8,128)(2,1)}', space=vmem, size = 0x4000, scoped, tag = 'scratch operand']
  #allocation4 [shape = 'f32[8,32]{1,0:T(8,128)}', space=vmem, size = 0x1000, scoped, tag = 'scratch operand']
  %s0 = inlined_call_operand.vmem [shape: f32[2,16,32], index: 0, kind: input, shape index: {}]
  %s1 = inlined_call_operand.vmem [shape: f32[2,16,32], index: 1, kind: input, shape index: {}]
  %s2 = inlined_call_operand.vmem [shape: f32[2,6,32], index: 2, kind: input, shape index: {}]
  %s3 = inlined_call_operand.vmem [shape: f32[4,8,8], index: 3, kind: input, shape index: {}]
  %s4 = inlined_call_operand.hbm [shape: bf16[32,32], index: 4, kind: input, shape index: {}]
  %s5 = inlined_call_operand.vmem [shape: f32[1,32], index: 5, kind: input, shape index: {}]
  %s6 = inlined_call_operand.vmem [shape: bf16[32,64], index: 6, kind: input, shape index: {}]
  %s7 = inlined_call_operand.hbm [shape: f32[1,64], index: 7, kind: input, shape index: {}]
  %s8 = inlined_call_operand.hbm [shape: bf16[32,32], index: 8, kind: input, shape index: {}]
  %s9 = inlined_call_operand.hbm [shape: f32[1,32], index: 9, kind: input, shape index: {}]
  %s10 = inlined_call_operand.vmem [shape: bf16[32,128], index: 10, kind: input, shape index: {}]
  %s11 = inlined_call_operand.vmem [shape: f32[1,128], index: 11, kind: input, shape index: {}]
  %s12 = inlined_call_operand.vmem [shape: bf16[128,32], index: 12, kind: input, shape index: {}]
  %s13 = inlined_call_operand.vmem [shape: f32[1,32], index: 13, kind: input, shape index: {}]
  %s14 = inlined_call_operand.hbm [shape: f32[2,16,32], index: 14, kind: output, shape index: {}]
  %s15 = sld [smem:[#allocation0]]
  $region116: #{tpu_custom_call.1} parent=0
    _
  %s17 = ssub.s32 1, %s15
  %s18 = scalar_select 0, %s17, %s15
  $region1: #{tpu_custom_call.1} parent=0
    #allocation5 [shape = 'u8[8192]{0}', space=vmem, size = 0x2000, scoped, tag = 'input window, operand 4, single buffered']
    #allocation6 [shape = 's32[2]{0}', space=sflag, size = 0x8, scoped, tag = 'scoped memory for tpu_custom_call.1']
    #allocation7 [shape = 's32[2]{0}', space=sflag, size = 0x8, scoped, tag = 'scoped memory for tpu_custom_call.1']
    #allocation8 [shape = 'u8[512]{0}', space=vmem, size = 0x400, scoped, tag = 'input window, operand 7, single buffered']
    #allocation9 [shape = 's32[1]{0}', space=sflag, size = 0x4, scoped, tag = 'scoped memory for tpu_custom_call.1']
    #allocation10 [shape = 'u8[8192]{0}', space=vmem, size = 0x2000, scoped, tag = 'input window, operand 8, single buffered']
    #allocation11 [shape = 'u8[512]{0}', space=vmem, size = 0x400, scoped, tag = 'input window, operand 9, single buffered']
    #allocation12 [shape = 's32[1]{0}', space=sflag, size = 0x4, scoped, tag = 'scoped memory for tpu_custom_call.1']
    #allocation13 [shape = 'u8[8192]{0}', space=vmem, size = 0x2000, scoped, tag = 'output window, operand 0']
    %19 = vsyncpa [#allocation6], 0
    %20 = vsyncpa [#allocation9], 0
    %21 = vsyncpa [#allocation12], 0
    %22 = vsyncpa [#allocation7], 0
    %s23 = scalar_lea.sflag [#allocation7], 1
    %24 = vsyncpa %s23, 0
    loop: start=0, step=1, limit=6
    $region2: #{tpu_custom_call.1} parent=1 // loop_pre_header
      _
    $region3: #{tpu_custom_call.1} parent=1 // loop_header
      %s26 = sphi 0, %s30
      %p27 = scmp.ge.s32.totalorder %s26, 6
      %s33 = sphi 0, %s45
      %s34 = sphi 0, %s41
      %s35 = sphi 0, %s33
      %s36 = sphi 0, %s34
      %s37 = sphi 0, %s35
      %s38 = sphi 0, %s36
      %s50 = sphi 0, %s52
      %s53 = sphi 0, %s50
      %s54 = sphi 0, %s53
      %s70 = sphi 0, %s54
      %s76 = sphi 0, %s78
      %s79 = sphi 0, %s76
      %s80 = sphi 0, %s79
      %s96 = sphi 0, %s80
      %s102 = sphi 0, %s104
      %s105 = sphi 0, %s102
      %s106 = sphi 0, %s105
      %s122 = sphi 0, %s106
      %s128 = sphi 0, %s130
      %s131 = sphi 0, %s128
      %s132 = sphi 0, %s131
      %s148 = sphi 0, %s132
      %s152 = sphi 0, %s152
      %s154 = sphi 0, %s152
      %s155 = sphi 0, %s154
      %s169 = sphi 0, %s155
      %s173 = sphi 0, %s173
      %s175 = sphi 0, %s173
      %s176 = sphi 0, %s175
      %s190 = sphi 0, %s176
      %s194 = sphi 0, %s194
      %s196 = sphi 0, %s194
      %s197 = sphi 0, %s196
      %s211 = sphi 0, %s197
      %s215 = sphi 0, %s215
      %s217 = sphi 0, %s215
      %s218 = sphi 0, %s217
      %s232 = sphi 0, %s218
      %s236 = sphi 0, %s236
      %s238 = sphi 0, %s236
      %s239 = sphi 0, %s238
      %s253 = sphi 0, %s239
      %s257 = sphi 0, %s257
      %s259 = sphi 0, %s257
      %s260 = sphi 0, %s259
      %s274 = sphi 0, %s260
      %s278 = sphi 0, %s278
      %s280 = sphi 0, %s278
      %s281 = sphi 0, %s280
      %s295 = sphi 0, %s281
      %s299 = sphi 0, %s299
      %s301 = sphi 0, %s299
      %s302 = sphi 0, %s301
      %s316 = sphi 0, %s302
      %s320 = sphi 0, %s320
      %s322 = sphi 0, %s320
      %s323 = sphi 0, %s322
      %s337 = sphi 0, %s323
      %s341 = sphi 0, %s341
      %s343 = sphi 0, %s341
      %s344 = sphi 0, %s343
      %s358 = sphi 0, %s344
      %s366 = sphi 0, %s368
      %s369 = sphi 0, %s366
      %s370 = sphi 0, %s369
      %s386 = sphi 0, %s370
    $region4: #{tpu_custom_call.1} parent=1 // loop_header_branch
      %29 = sbr.rel (%p27) target = $region8
    $region5: #{tpu_custom_call.1} parent=1 // loop_body
      %s31 = ssub.s32 %s26, 1
      %s32 = ssub.s32 %s26, 2
      %s39 = sadd.s32 1, %s34
      %p40 = scmp.ge.s32.totalorder %s39, 2
      %s41 = scalar_select %p40, 0, %s39
      %s42 = sadd.s32 1, %s33
      %s43 = scalar_select %p40, %s42, %s33
      %p44 = scmp.ge.s32.totalorder %s43, 2
      %s45 = scalar_select %p44, 0, %s43
      %s46 = ssub.s32 %s33, %s45
      %s47 = ssub.s32 %s34, %s41
      %s48 = sor.u32 %s46, %s47
      %p49 = scmp.eq.s32.totalorder %s48, 0
      %s51 = sadd.s32 %s50, 1
      %s52 = scalar_select %p49, %s50, %s51
      %p55 = pneg %p49
      %p56 = scmp.eq.s32.totalorder %s26, 3
      %p57 = por %p55, %p56
      %p58 = scmp.ne.s32.totalorder %s50, %s53
      %p59 = scmp.eq.s32.totalorder %s26, 0
      %p60 = por %p58, %p59
      %p61 = scmp.ne.s32.totalorder %s50, %s53
      %p62 = scmp.eq.s32.totalorder %s31, 3
      %p63 = por %p61, %p62
      %p64 = scmp.ne.s32.totalorder %s53, %s54
      %p65 = scmp.eq.s32.totalorder %s31, 0
      %p66 = por %p64, %p65
      %p67 = scmp.ne.s32.totalorder %s53, %s54
      %p68 = scmp.eq.s32.totalorder %s32, 3
      %p69 = por %p67, %p68
      %p71 = scmp.ne.s32.totalorder %s54, %s70
      %p72 = scmp.eq.s32.totalorder %s32, 0
      %p73 = por %p71, %p72
      %s74 = ssub.s32 %s33, %s45
      %p75 = scmp.eq.s32.totalorder %s74, 0
      %s77 = sadd.s32 %s76, 1
      %s78 = scalar_select %p75, %s76, %s77
      %p81 = pneg %p75
      %p82 = scmp.eq.s32.totalorder %s26, 3
      %p83 = por %p81, %p82
      %p84 = scmp.ne.s32.totalorder %s76, %s79
      %p85 = scmp.eq.s32.totalorder %s26, 0
      %p86 = por %p84, %p85
      %p87 = scmp.ne.s32.totalorder %s76, %s79
      %p88 = scmp.eq.s32.totalorder %s31, 3
      %p89 = por %p87, %p88
      %p90 = scmp.ne.s32.totalorder %s79, %s80
      %p91 = scmp.eq.s32.totalorder %s31, 0
      %p92 = por %p90, %p91
      %p93 = scmp.ne.s32.totalorder %s79, %s80
      %p94 = scmp.eq.s32.totalorder %s32, 3
      %p95 = por %p93, %p94
      %p97 = scmp.ne.s32.totalorder %s80, %s96
      %p98 = scmp.eq.s32.totalorder %s32, 0
      %p99 = por %p97, %p98
      %s100 = ssub.s32 %s33, %s45
      %p101 = scmp.eq.s32.totalorder %s100, 0
      %s103 = sadd.s32 %s102, 1
      %s104 = scalar_select %p101, %s102, %s103
      %p107 = pneg %p101
      %p108 = scmp.eq.s32.totalorder %s26, 3
      %p109 = por %p107, %p108
      %p110 = scmp.ne.s32.totalorder %s102, %s105
      %p111 = scmp.eq.s32.totalorder %s26, 0
      %p112 = por %p110, %p111
      %p113 = scmp.ne.s32.totalorder %s102, %s105
      %p114 = scmp.eq.s32.totalorder %s31, 3
      %p115 = por %p113, %p114
      %p116 = scmp.ne.s32.totalorder %s105, %s106
      %p117 = scmp.eq.s32.totalorder %s31, 0
      %p118 = por %p116, %p117
      %p119 = scmp.ne.s32.totalorder %s105, %s106
      %p120 = scmp.eq.s32.totalorder %s32, 3
      %p121 = por %p119, %p120
      %p123 = scmp.ne.s32.totalorder %s106, %s122
      %p124 = scmp.eq.s32.totalorder %s32, 0
      %p125 = por %p123, %p124
      %s126 = ssub.s32 %s34, %s41
      %p127 = scmp.eq.s32.totalorder %s126, 0
      %s129 = sadd.s32 %s128, 1
      %s130 = scalar_select %p127, %s128, %s129
      %p133 = pneg %p127
      %p134 = scmp.eq.s32.totalorder %s26, 3
      %p135 = por %p133, %p134
      %p136 = scmp.ne.s32.totalorder %s128, %s131
      %p137 = scmp.eq.s32.totalorder %s26, 0
      %p138 = por %p136, %p137
      %p139 = scmp.ne.s32.totalorder %s128, %s131
      %p140 = scmp.eq.s32.totalorder %s31, 3
      %p141 = por %p139, %p140
      %p142 = scmp.ne.s32.totalorder %s131, %s132
      %p143 = scmp.eq.s32.totalorder %s31, 0
      %p144 = por %p142, %p143
      %p145 = scmp.ne.s32.totalorder %s131, %s132
      %p146 = scmp.eq.s32.totalorder %s32, 3
      %p147 = por %p145, %p146
      %p149 = scmp.ne.s32.totalorder %s132, %s148
      %p150 = scmp.eq.s32.totalorder %s32, 0
      %p151 = por %p149, %p150
      %s153 = sadd.s32 %s152, 1
      %p156 = scmp.eq.s32.totalorder %s26, 3
      %p157 = scmp.ne.s32.totalorder %s152, %s154
      %p158 = scmp.eq.s32.totalorder %s26, 0
      %p159 = por %p157, %p158
      %p160 = scmp.ne.s32.totalorder %s152, %s154
      %p161 = scmp.eq.s32.totalorder %s31, 3
      %p162 = por %p160, %p161
      %p163 = scmp.ne.s32.totalorder %s154, %s155
      %p164 = scmp.eq.s32.totalorder %s31, 0
      %p165 = por %p163, %p164
      %p166 = scmp.ne.s32.totalorder %s154, %s155
      %p167 = scmp.eq.s32.totalorder %s32, 3
      %p168 = por %p166, %p167
      %p170 = scmp.ne.s32.totalorder %s155, %s169
      %p171 = scmp.eq.s32.totalorder %s32, 0
      %p172 = por %p170, %p171
      %s174 = sadd.s32 %s173, 1
      %p177 = scmp.eq.s32.totalorder %s26, 3
      %p178 = scmp.ne.s32.totalorder %s173, %s175
      %p179 = scmp.eq.s32.totalorder %s26, 0
      %p180 = por %p178, %p179
      %p181 = scmp.ne.s32.totalorder %s173, %s175
      %p182 = scmp.eq.s32.totalorder %s31, 3
      %p183 = por %p181, %p182
      %p184 = scmp.ne.s32.totalorder %s175, %s176
      %p185 = scmp.eq.s32.totalorder %s31, 0
      %p186 = por %p184, %p185
      %p187 = scmp.ne.s32.totalorder %s175, %s176
      %p188 = scmp.eq.s32.totalorder %s32, 3
      %p189 = por %p187, %p188
      %p191 = scmp.ne.s32.totalorder %s176, %s190
      %p192 = scmp.eq.s32.totalorder %s32, 0
      %p193 = por %p191, %p192
      %s195 = sadd.s32 %s194, 1
      %p198 = scmp.eq.s32.totalorder %s26, 3
      %p199 = scmp.ne.s32.totalorder %s194, %s196
      %p200 = scmp.eq.s32.totalorder %s26, 0
      %p201 = por %p199, %p200
      %p202 = scmp.ne.s32.totalorder %s194, %s196
      %p203 = scmp.eq.s32.totalorder %s31, 3
      %p204 = por %p202, %p203
      %p205 = scmp.ne.s32.totalorder %s196, %s197
      %p206 = scmp.eq.s32.totalorder %s31, 0
      %p207 = por %p205, %p206
      %p208 = scmp.ne.s32.totalorder %s196, %s197
      %p209 = scmp.eq.s32.totalorder %s32, 3
      %p210 = por %p208, %p209
      %p212 = scmp.ne.s32.totalorder %s197, %s211
      %p213 = scmp.eq.s32.totalorder %s32, 0
      %p214 = por %p212, %p213
      %s216 = sadd.s32 %s215, 1
      %p219 = scmp.eq.s32.totalorder %s26, 3
      %p220 = scmp.ne.s32.totalorder %s215, %s217
      %p221 = scmp.eq.s32.totalorder %s26, 0
      %p222 = por %p220, %p221
      %p223 = scmp.ne.s32.totalorder %s215, %s217
      %p224 = scmp.eq.s32.totalorder %s31, 3
      %p225 = por %p223, %p224
      %p226 = scmp.ne.s32.totalorder %s217, %s218
      %p227 = scmp.eq.s32.totalorder %s31, 0
      %p228 = por %p226, %p227
      %p229 = scmp.ne.s32.totalorder %s217, %s218
      %p230 = scmp.eq.s32.totalorder %s32, 3
      %p231 = por %p229, %p230
      %p233 = scmp.ne.s32.totalorder %s218, %s232
      %p234 = scmp.eq.s32.totalorder %s32, 0
      %p235 = por %p233, %p234
      %s237 = sadd.s32 %s236, 1
      %p240 = scmp.eq.s32.totalorder %s26, 3
      %p241 = scmp.ne.s32.totalorder %s236, %s238
      %p242 = scmp.eq.s32.totalorder %s26, 0
      %p243 = por %p241, %p242
      %p244 = scmp.ne.s32.totalorder %s236, %s238
      %p245 = scmp.eq.s32.totalorder %s31, 3
      %p246 = por %p244, %p245
      %p247 = scmp.ne.s32.totalorder %s238, %s239
      %p248 = scmp.eq.s32.totalorder %s31, 0
      %p249 = por %p247, %p248
      %p250 = scmp.ne.s32.totalorder %s238, %s239
      %p251 = scmp.eq.s32.totalorder %s32, 3
      %p252 = por %p250, %p251
      %p254 = scmp.ne.s32.totalorder %s239, %s253
      %p255 = scmp.eq.s32.totalorder %s32, 0
      %p256 = por %p254, %p255
      %s258 = sadd.s32 %s257, 1
      %p261 = scmp.eq.s32.totalorder %s26, 3
      %p262 = scmp.ne.s32.totalorder %s257, %s259
      %p263 = scmp.eq.s32.totalorder %s26, 0
      %p264 = por %p262, %p263
      %p265 = scmp.ne.s32.totalorder %s257, %s259
      %p266 = scmp.eq.s32.totalorder %s31, 3
      %p267 = por %p265, %p266
      %p268 = scmp.ne.s32.totalorder %s259, %s260
      %p269 = scmp.eq.s32.totalorder %s31, 0
      %p270 = por %p268, %p269
      %p271 = scmp.ne.s32.totalorder %s259, %s260
      %p272 = scmp.eq.s32.totalorder %s32, 3
      %p273 = por %p271, %p272
      %p275 = scmp.ne.s32.totalorder %s260, %s274
      %p276 = scmp.eq.s32.totalorder %s32, 0
      %p277 = por %p275, %p276
      %s279 = sadd.s32 %s278, 1
      %p282 = scmp.eq.s32.totalorder %s26, 3
      %p283 = scmp.ne.s32.totalorder %s278, %s280
      %p284 = scmp.eq.s32.totalorder %s26, 0
      %p285 = por %p283, %p284
      %p286 = scmp.ne.s32.totalorder %s278, %s280
      %p287 = scmp.eq.s32.totalorder %s31, 3
      %p288 = por %p286, %p287
      %p289 = scmp.ne.s32.totalorder %s280, %s281
      %p290 = scmp.eq.s32.totalorder %s31, 0
      %p291 = por %p289, %p290
      %p292 = scmp.ne.s32.totalorder %s280, %s281
      %p293 = scmp.eq.s32.totalorder %s32, 3
      %p294 = por %p292, %p293
      %p296 = scmp.ne.s32.totalorder %s281, %s295
      %p297 = scmp.eq.s32.totalorder %s32, 0
      %p298 = por %p296, %p297
      %s300 = sadd.s32 %s299, 1
      %p303 = scmp.eq.s32.totalorder %s26, 3
      %p304 = scmp.ne.s32.totalorder %s299, %s301
      %p305 = scmp.eq.s32.totalorder %s26, 0
      %p306 = por %p304, %p305
      %p307 = scmp.ne.s32.totalorder %s299, %s301
      %p308 = scmp.eq.s32.totalorder %s31, 3
      %p309 = por %p307, %p308
      %p310 = scmp.ne.s32.totalorder %s301, %s302
      %p311 = scmp.eq.s32.totalorder %s31, 0
      %p312 = por %p310, %p311
      %p313 = scmp.ne.s32.totalorder %s301, %s302
      %p314 = scmp.eq.s32.totalorder %s32, 3
      %p315 = por %p313, %p314
      %p317 = scmp.ne.s32.totalorder %s302, %s316
      %p318 = scmp.eq.s32.totalorder %s32, 0
      %p319 = por %p317, %p318
      %s321 = sadd.s32 %s320, 1
      %p324 = scmp.eq.s32.totalorder %s26, 3
      %p325 = scmp.ne.s32.totalorder %s320, %s322
      %p326 = scmp.eq.s32.totalorder %s26, 0
      %p327 = por %p325, %p326
      %p328 = scmp.ne.s32.totalorder %s320, %s322
      %p329 = scmp.eq.s32.totalorder %s31, 3
      %p330 = por %p328, %p329
      %p331 = scmp.ne.s32.totalorder %s322, %s323
      %p332 = scmp.eq.s32.totalorder %s31, 0
      %p333 = por %p331, %p332
      %p334 = scmp.ne.s32.totalorder %s322, %s323
      %p335 = scmp.eq.s32.totalorder %s32, 3
      %p336 = por %p334, %p335
      %p338 = scmp.ne.s32.totalorder %s323, %s337
      %p339 = scmp.eq.s32.totalorder %s32, 0
      %p340 = por %p338, %p339
      %s342 = sadd.s32 %s341, 1
      %p345 = scmp.eq.s32.totalorder %s26, 3
      %p346 = scmp.ne.s32.totalorder %s341, %s343
      %p347 = scmp.eq.s32.totalorder %s26, 0
      %p348 = por %p346, %p347
      %p349 = scmp.ne.s32.totalorder %s341, %s343
      %p350 = scmp.eq.s32.totalorder %s31, 3
      %p351 = por %p349, %p350
      %p352 = scmp.ne.s32.totalorder %s343, %s344
      %p353 = scmp.eq.s32.totalorder %s31, 0
      %p354 = por %p352, %p353
      %p355 = scmp.ne.s32.totalorder %s343, %s344
      %p356 = scmp.eq.s32.totalorder %s32, 3
      %p357 = por %p355, %p356
      %p359 = scmp.ne.s32.totalorder %s344, %s358
      %p360 = scmp.eq.s32.totalorder %s32, 0
      %p361 = por %p359, %p360
      %s362 = ssub.s32 %s33, %s45
      %s363 = ssub.s32 %s34, %s41
      %s364 = sor.u32 %s362, %s363
      %p365 = scmp.eq.s32.totalorder %s364, 0
      %s367 = sadd.s32 %s366, 1
      %s368 = scalar_select %p365, %s366, %s367
      %p371 = pneg %p365
      %p372 = scmp.eq.s32.totalorder %s26, 3
      %p373 = por %p371, %p372
      %p374 = scmp.ne.s32.totalorder %s366, %s369
      %p375 = scmp.eq.s32.totalorder %s26, 0
      %p376 = por %p374, %p375
      %p377 = scmp.ne.s32.totalorder %s366, %s369
      %p378 = scmp.eq.s32.totalorder %s31, 3
      %p379 = por %p377, %p378
      %p380 = scmp.ne.s32.totalorder %s369, %s370
      %p381 = scmp.eq.s32.totalorder %s31, 0
      %p382 = por %p380, %p381
      %p383 = scmp.ne.s32.totalorder %s369, %s370
      %p384 = scmp.eq.s32.totalorder %s32, 3
      %p385 = por %p383, %p384
      %p387 = scmp.ne.s32.totalorder %s370, %s386
      %p388 = scmp.eq.s32.totalorder %s32, 0
      %p389 = por %p387, %p388
      %p390 = scmp.le.s32.totalorder 1, %s26
      %p391 = scmp.lt.s32.totalorder %s26, 5
      %p392 = pnand %p390, %p391
      %p393 = pneg %p392
      // Predicated region
      $region9: #{tpu_custom_call.1} parent=5 // pred_check
        _
      $region10: #{tpu_custom_call.1} parent=5 // pred_check_branch
        %395 = sbr.rel (%p392) target = $region12
      $region11: #{tpu_custom_call.1} parent=5 // pred_region
        %s396 = ssub.s32 %s26, 1
        // Predicated region
        $region13: #{tpu_custom_call.1} parent=11 // pred_check
          %p397 = pneg %p165
        $region14: #{tpu_custom_call.1} parent=11 // pred_check_branch
          %399 = sbr.rel (%p397) target = $region16
        $region15: #{tpu_custom_call.1} parent=11 // pred_region
          %s401 = ssub.s32 256, 256
          %402 = vsyncadd [#allocation6], %s401
          %s403 = sshll.u32 [#allocation5], 4
          %s404 = int_to_ptr.vmem [resolvable:$true] %s403
          %409 = dma.hbm_to_vmem [thread:$0]  %s4, 256, %s404, [#allocation6], 64, 64, 4
        $region16: #{tpu_custom_call.1} parent=11 // pred_fallthru
          _
        // Predicated region
        $region17: #{tpu_custom_call.1} parent=11 // pred_check
          %p410 = pneg %p186
        $region18: #{tpu_custom_call.1} parent=11 // pred_check_branch
          %412 = sbr.rel (%p410) target = $region20
        $region19: #{tpu_custom_call.1} parent=11 // pred_region
          _
        $region20: #{tpu_custom_call.1} parent=11 // pred_fallthru
          _
        // Predicated region
        $region21: #{tpu_custom_call.1} parent=11 // pred_check
          %p413 = pneg %p207
        $region22: #{tpu_custom_call.1} parent=11 // pred_check_branch
          %415 = sbr.rel (%p413) target = $region24
        $region23: #{tpu_custom_call.1} parent=11 // pred_region
          _
        $region24: #{tpu_custom_call.1} parent=11 // pred_fallthru
          _
        // Predicated region
        $region25: #{tpu_custom_call.1} parent=11 // pred_check
          %p416 = pneg %p228
        $region26: #{tpu_custom_call.1} parent=11 // pred_check_branch
          %418 = sbr.rel (%p416) target = $region28
        $region27: #{tpu_custom_call.1} parent=11 // pred_region
          %s420 = ssub.s32 16, 16
          %421 = vsyncadd [#allocation9], %s420
          %s423 = sshll.u32 [#allocation8], 4
          %s424 = int_to_ptr.vmem [resolvable:$true] %s423
          %426 = dma.hbm_to_vmem [thread:$0]  %s7, 16, %s424, [#allocation9]
        $region28: #{tpu_custom_call.1} parent=11 // pred_fallthru
          _
        // Predicated region
        $region29: #{tpu_custom_call.1} parent=11 // pred_check
          %p427 = pneg %p249
        $region30: #{tpu_custom_call.1} parent=11 // pred_check_branch
          %429 = sbr.rel (%p427) target = $region32
        $region31: #{tpu_custom_call.1} parent=11 // pred_region
          %s431 = ssub.s32 256, 256
          %432 = vsyncadd [#allocation9], %s431
          %s433 = sshll.u32 [#allocation10], 4
          %s434 = int_to_ptr.vmem [resolvable:$true] %s433
          %439 = dma.hbm_to_vmem [thread:$0]  %s8, 256, %s434, [#allocation9], 64, 64, 4
        $region32: #{tpu_custom_call.1} parent=11 // pred_fallthru
          _
        // Predicated region
        $region33: #{tpu_custom_call.1} parent=11 // pred_check
          %p440 = pneg %p270
        $region34: #{tpu_custom_call.1} parent=11 // pred_check_branch
          %442 = sbr.rel (%p440) target = $region36
        $region35: #{tpu_custom_call.1} parent=11 // pred_region
          %s444 = ssub.s32 16, 16
          %445 = vsyncadd [#allocation12], %s444
          %s447 = sshll.u32 [#allocation11], 4
          %s448 = int_to_ptr.vmem [resolvable:$true] %s447
          %450 = dma.hbm_to_vmem [thread:$0]  %s9, 16, %s448, [#allocation12]
        $region36: #{tpu_custom_call.1} parent=11 // pred_fallthru
          _
        // Predicated region
        $region37: #{tpu_custom_call.1} parent=11 // pred_check
          %p451 = pneg %p291
        $region38: #{tpu_custom_call.1} parent=11 // pred_check_branch
          %453 = sbr.rel (%p451) target = $region40
        $region39: #{tpu_custom_call.1} parent=11 // pred_region
          _
        $region40: #{tpu_custom_call.1} parent=11 // pred_fallthru
          _
        // Predicated region
        $region41: #{tpu_custom_call.1} parent=11 // pred_check
          %p454 = pneg %p312
        $region42: #{tpu_custom_call.1} parent=11 // pred_check_branch
          %456 = sbr.rel (%p454) target = $region44
        $region43: #{tpu_custom_call.1} parent=11 // pred_region
          _
        $region44: #{tpu_custom_call.1} parent=11 // pred_fallthru
          _
        // Predicated region
        $region45: #{tpu_custom_call.1} parent=11 // pred_check
          %p457 = pneg %p333
        $region46: #{tpu_custom_call.1} parent=11 // pred_check_branch
          %459 = sbr.rel (%p457) target = $region48
        $region47: #{tpu_custom_call.1} parent=11 // pred_region
          _
        $region48: #{tpu_custom_call.1} parent=11 // pred_fallthru
          _
        // Predicated region
        $region49: #{tpu_custom_call.1} parent=11 // pred_check
          %p460 = pneg %p354
        $region50: #{tpu_custom_call.1} parent=11 // pred_check_branch
          %462 = sbr.rel (%p460) target = $region52
        $region51: #{tpu_custom_call.1} parent=11 // pred_region
          _
        $region52: #{tpu_custom_call.1} parent=11 // pred_fallthru
          _
      $region12: #{tpu_custom_call.1} parent=5 // pred_fallthru
        _
      %p463 = scmp.lt.s32.totalorder %s26, 4
      // Predicated region
      $region53: #{tpu_custom_call.1} parent=5 // pred_check
        %p464 = pneg %p463
      $region54: #{tpu_custom_call.1} parent=5 // pred_check_branch
        %466 = sbr.rel (%p464) target = $region56
      $region55: #{tpu_custom_call.1} parent=5 // pred_region
        // Predicated region
        $region57: #{tpu_custom_call.1} parent=55 // pred_check
          %p467 = pneg %p60
        $region58: #{tpu_custom_call.1} parent=55 // pred_check_branch
          %469 = sbr.rel (%p467) target = $region60
        $region59: #{tpu_custom_call.1} parent=55 // pred_region
          %p470 = scmp.lt.s32.totalorder %s33, 1
          %s471 = scalar_select %p470, %s33, 1
          %p472 = scmp.lt.s32.totalorder %s34, 1
          %s473 = scalar_select %p472, %s34, 1
          %s474 = smul.addr %s471, 2
          %s475 = sadd.s32 %s473, %s474
          %s476 = smul.addr %s475, 8
          %s477 = scalar_lea.vmem %s0, %s476
        $region60: #{tpu_custom_call.1} parent=55 // pred_fallthru
          _
        // Predicated region
        $region61: #{tpu_custom_call.1} parent=55 // pred_check
          %p478 = pneg %p86
        $region62: #{tpu_custom_call.1} parent=55 // pred_check_branch
          %480 = sbr.rel (%p478) target = $region64
        $region63: #{tpu_custom_call.1} parent=55 // pred_region
          %p481 = scmp.lt.s32.totalorder %s33, 1
          %s482 = scalar_select %p481, %s33, 1
          %s483 = smul.addr %s482, 2
          %s484 = smul.addr %s483, 8
          %s485 = scalar_lea.vmem %s1, %s484
        $region64: #{tpu_custom_call.1} parent=55 // pred_fallthru
          _
        // Predicated region
        $region65: #{tpu_custom_call.1} parent=55 // pred_check
          %p486 = pneg %p112
        $region66: #{tpu_custom_call.1} parent=55 // pred_check_branch
          %488 = sbr.rel (%p486) target = $region68
        $region67: #{tpu_custom_call.1} parent=55 // pred_region
          %p489 = scmp.lt.s32.totalorder %s33, 1
          %s490 = scalar_select %p489, %s33, 1
          %s491 = smul.addr %s490, 8
          %s492 = scalar_lea.vmem %s2, %s491
        $region68: #{tpu_custom_call.1} parent=55 // pred_fallthru
          _
        // Predicated region
        $region69: #{tpu_custom_call.1} parent=55 // pred_check
          %p493 = pneg %p138
        $region70: #{tpu_custom_call.1} parent=55 // pred_check_branch
          %495 = sbr.rel (%p493) target = $region72
        $region71: #{tpu_custom_call.1} parent=55 // pred_region
          %s496 = smul.u32 2, %s34
          %p497 = scmp.lt.s32.totalorder %s496, 3
          %s498 = scalar_select %p497, %s496, 3
          %s499 = smul.addr %s498, 8
          %s500 = scalar_lea.vmem %s3, %s499
          %s501 = smul.u32 2, %s34
        $region72: #{tpu_custom_call.1} parent=55 // pred_fallthru
          _
      $region56: #{tpu_custom_call.1} parent=5 // pred_fallthru
        _
      %p502 = scmp.le.s32.totalorder 1, %s26
      %p503 = scmp.lt.s32.totalorder %s26, 5
      %p504 = pnand %p502, %p503
      %p505 = pneg %p504
      // Predicated region
      $region73: #{tpu_custom_call.1} parent=5 // pred_check
        _
      $region74: #{tpu_custom_call.1} parent=5 // pred_check_branch
        %507 = sbr.rel (%p504) target = $region76
      $region75: #{tpu_custom_call.1} parent=5 // pred_region
        %s508 = ssub.s32 %s26, 1
        // Predicated region
        $region77: #{tpu_custom_call.1} parent=75 // pred_check
          %p509 = pneg %p165
        $region78: #{tpu_custom_call.1} parent=75 // pred_check_branch
          %511 = sbr.rel (%p509) target = $region80
        $region79: #{tpu_custom_call.1} parent=75 // pred_region
          %512 = dma.done [#allocation6], 256
        $region80: #{tpu_custom_call.1} parent=75 // pred_fallthru
          _
        // Predicated region
        $region81: #{tpu_custom_call.1} parent=75 // pred_check
          %p513 = pneg %p228
        $region82: #{tpu_custom_call.1} parent=75 // pred_check_branch
          %515 = sbr.rel (%p513) target = $region84
        $region83: #{tpu_custom_call.1} parent=75 // pred_region
          %516 = dma.done [#allocation9], 16
        $region84: #{tpu_custom_call.1} parent=75 // pred_fallthru
          _
        // Predicated region
        $region85: #{tpu_custom_call.1} parent=75 // pred_check
          %p517 = pneg %p249
        $region86: #{tpu_custom_call.1} parent=75 // pred_check_branch
          %519 = sbr.rel (%p517) target = $region88
        $region87: #{tpu_custom_call.1} parent=75 // pred_region
          %520 = dma.done [#allocation9], 256
        $region88: #{tpu_custom_call.1} parent=75 // pred_fallthru
          _
        // Predicated region
        $region89: #{tpu_custom_call.1} parent=75 // pred_check
          %p521 = pneg %p270
        $region90: #{tpu_custom_call.1} parent=75 // pred_check_branch
          %523 = sbr.rel (%p521) target = $region92
        $region91: #{tpu_custom_call.1} parent=75 // pred_region
          %524 = dma.done [#allocation12], 16
        $region92: #{tpu_custom_call.1} parent=75 // pred_fallthru
          _
        %p525 = scmp.lt.s32.totalorder %s35, 1
        %s526 = scalar_select %p525, %s35, 1
        %p527 = scmp.lt.s32.totalorder %s36, 1
        %s528 = scalar_select %p527, %s36, 1
        %s529 = smul.addr %s526, 2
        %s530 = sadd.s32 %s528, %s529
        %s531 = smul.addr %s530, 8
        %s532 = scalar_lea.vmem %s0, %s531
        %p533 = pneg %p66
        %p534 = pneg %p63
        %p535 = scmp.lt.s32.totalorder %s35, 1
        %s536 = scalar_select %p535, %s35, 1
        %s537 = smul.addr %s536, 2
        %s538 = smul.addr %s537, 8
        %s539 = scalar_lea.vmem %s1, %s538
        %p540 = pneg %p92
        %p541 = pneg %p89
        %p542 = scmp.lt.s32.totalorder %s35, 1
        %s543 = scalar_select %p542, %s35, 1
        %s544 = smul.addr %s543, 8
        %s545 = scalar_lea.vmem %s2, %s544
        %p546 = pneg %p118
        %p547 = pneg %p115
        %s548 = smul.u32 2, %s36
        %p549 = scmp.lt.s32.totalorder %s548, 3
        %s550 = scalar_select %p549, %s548, 3
        %s551 = smul.addr %s550, 8
        %s552 = scalar_lea.vmem %s3, %s551
        %p553 = pneg %p144
        %p554 = pneg %p141
        %p555 = pneg %p165
        %p556 = pneg %p162
        %p557 = pneg %p186
        %p558 = pneg %p183
        %p559 = pneg %p207
        %p560 = pneg %p204
        %p561 = pneg %p228
        %p562 = pneg %p225
        %p563 = pneg %p249
        %p564 = pneg %p246
        %p565 = pneg %p270
        %p566 = pneg %p267
        %p567 = pneg %p291
        %p568 = pneg %p288
        %p569 = pneg %p312
        %p570 = pneg %p309
        %p571 = pneg %p333
        %p572 = pneg %p330
        %p573 = pneg %p354
        %p574 = pneg %p351
        %p575 = pneg %p382
        %p576 = pneg %p379
        %s577 = sand.u32 %s369, 1
        %s578 = scalar_lea.sflag [#allocation7], %s577
        %s579 = sand.u32 %s369, 1
        %s580 = smul.addr %s579, 8
        %s581 = scalar_lea.vmem [#allocation13], %s580
        %p582 = scmp.lt.s32.totalorder %s35, 1
        %s583 = scalar_select %p582, %s35, 1
        %p584 = scmp.lt.s32.totalorder %s36, 1
        %s585 = scalar_select %p584, %s36, 1
        %s586 = smul.addr %s583, 2
        %s587 = sadd.s32 %s585, %s586
        %s588 = smul.addr %s587, 8
        %s589 = scalar_lea.vmem %s0, %s588
        %p590 = scmp.lt.s32.totalorder %s35, 1
        %s591 = scalar_select %p590, %s35, 1
        %s592 = smul.addr %s591, 2
        %s593 = smul.addr %s592, 8
        %s594 = scalar_lea.vmem %s1, %s593
        %p595 = scmp.lt.s32.totalorder %s35, 1
        %s596 = scalar_select %p595, %s35, 1
        %s597 = smul.addr %s596, 8
        %s598 = scalar_lea.vmem %s2, %s597
        %s599 = smul.u32 2, %s36
        %p600 = scmp.lt.s32.totalorder %s599, 3
        %s601 = scalar_select %p600, %s599, 3
        %s602 = smul.addr %s601, 8
        %s603 = scalar_lea.vmem %s3, %s602
        %s604 = smul.u32 2, %s36
        %v606 = vld [vmem:[%s598] sm:$0x3f]
        %p607 = scmp.eq.s32.totalorder %s36, 0
        // Predicated region
        $region93: #{tpu_custom_call.1} parent=75 // pred_check
          %p608 = pneg %p607
        $region94: #{tpu_custom_call.1} parent=75 // pred_check_branch
          %610 = sbr.rel (%p608) target = $region96
        $region95: #{tpu_custom_call.1} parent=75 // pred_region
          %v611 = vld [vmem:[%s594] sm:$0xff]
          %v612 = vld [vmem:[%s594 + $0x8] sm:$0xff]
          %vm613 = vcmask 261120
          %v614 = vsel %vm613, %v611, 0.0
          %615 = vadd.xlane.f32.xlu0 %v614
          %v616 = vpop.xlane.xlu0 %615
          %v617 = vsel %vm613, %v612, 0.0
          %618 = vadd.xlane.f32.xlu0 %v617
          %v619 = vpop.xlane.xlu0 %618
          %v620 = vrcp.pop 32.0
          %v621 = vmul.f32 %v616, %v620
          %v622 = vmul.f32 %v619, %v620
          %v623 = vsub.f32 %v611, %v621
          %v624 = vsub.f32 %v612, %v622
          %v625 = vmul.f32 %v623, %v623
          %v626 = vmul.f32 %v624, %v624
          %v627 = vsel %vm613, %v625, 0.0
          %628 = vadd.xlane.f32.xlu0 %v627
          %v629 = vpop.xlane.xlu0 %628
          %v630 = vsel %vm613, %v626, 0.0
          %631 = vadd.xlane.f32.xlu0 %v630
          %v632 = vpop.xlane.xlu0 %631
          %v633 = vmul.f32 %v629, %v620
          %v634 = vmul.f32 %v632, %v620
          %v635 = vadd.f32 %v633, 1e-06
          %v636 = vadd.f32 %v634, 1e-06
          %v637 = vrsqrt.pop %v635
          %v638 = vrsqrt.pop %v636
          %v639 = vmul.f32 %v623, %v637
          %v640 = vmul.f32 %v624, %v638
          %v641 = vadd.f32 %v606, 1.0
          %v642 = vlaneseq
          %v643 = vshrl.u32 %v642, 7
          %v644 = vsub.s32 2, %v643
          %v645 = vrot.slane %v641, %v644
          %v646 = vmul.f32 %v639, %v645
          %v647 = vmul.f32 %v640, %v645
          %v648 = vlaneseq
          %v649 = vshrl.u32 %v648, 7
          %v650 = vsub.s32 4, %v649
          %v651 = vrot.slane %v606, %v650
          %v652 = vadd.f32 %v646, %v651
          %v653 = vadd.f32 %v647, %v651
          %v654 = vpack.c.bf16 %v653, %v652
          %v655 = vld [vmem:[%s6] sm:$0xf]
          %v656 = vld [vmem:[%s6 + $0x4] sm:$0xf]
          %v657 = vld [vmem:[%s6 + $0x8] sm:$0xf]
          %v658 = vld [vmem:[%s6 + $0xc] sm:$0xf]
          %v659 = vld [vmem:[#allocation8] sm:$0x1]
          %v661 = vlaneseq
          %v662 = vshrl.u32 %v661, 7
          %v663 = vsub.s32 0, %v662
          %v664 = vrot.slane %v659, %v663
          %v670 = vunpack.c.l.b16 %v655
          %v671 = vunpack.c.l.b16 %v656
          %v672 = vunpack.c.l.b16 %v657
          %v673 = vunpack.c.l.b16 %v658
          %v674 = vpack.c.b16 %v671, %v670
          %v675 = vpack.c.b16 %v673, %v672
          %v679 = vsel %vm613, %v654, 0
          %681 = vmatprep.subr.bf16.mxu0 0
          %682 = vmatpush1.bf16.msra.mxu0 %v674
          %683 = vmatprep.subr.bf16.mxu0 0
          %684 = vmatpush1.bf16.msra.mxu0 %v675
          %685 = vmatprep.subr.bf16.mxu0 0
          %686 = vmatpush1.bf16.msra.mxu0 0
          %687 = vmatprep.subr.bf16.mxu0 0
          %688 = vmatpush1.bf16.msra.mxu0 0
          %689 = vmatprep.subr.bf16.mxu0 0
          %690 = vmatpush1.bf16.msra.mxu0 0
          %691 = vmatprep.subr.bf16.mxu0 0
          %692 = vmatpush1.bf16.msra.mxu0 0
          %693 = vmatprep.subr.bf16.mxu0 0
          %694 = vmatpush1.bf16.msra.mxu0 0
          %695 = vmatprep.subr.bf16.mxu0 0
          %696 = vmatpush1.bf16.msra.mxu0 0
          %697 = vmatprep.subr.bf16.mxu0 0
          %698 = vmatpush1.bf16.msra.mxu0 0
          %699 = vmatprep.subr.bf16.mxu0 0
          %700 = vmatpush1.bf16.msra.mxu0 0
          %701 = vmatprep.subr.bf16.mxu0 0
          %702 = vmatpush1.bf16.msra.mxu0 0
          %703 = vmatprep.subr.bf16.mxu0 0
          %704 = vmatpush1.bf16.msra.mxu0 0
          %705 = vmatprep.subr.bf16.mxu0 0
          %706 = vmatpush1.bf16.msra.mxu0 0
          %707 = vmatprep.subr.bf16.mxu0 0
          %708 = vmatpush1.bf16.msra.mxu0 0
          %709 = vmatprep.subr.bf16.mxu0 0
          %710 = vmatpush1.bf16.msra.mxu0 0
          %711 = vmatprep.subr.bf16.mxu0 0
          %712 = vmatpush1.bf16.msra.mxu0 0
          %713 = vmatprep.mubr.bf16.mxu0 0
          %714 = vmatmul.mubr.bf16.gmra.mrb[0].mxu0 %v679
          %v715 = vpop.f32.mrb[0].mxu0
          %v716 = vadd.f32 %v664, %v715
          %v717 = vpop.f32.mrb[0].mxu0
          %v718 = vpop.f32.mrb[0].mxu0
          %v719 = vadd.f32 %v664, %v718
          %v720 = vpop.f32.mrb[0].mxu0
          %721 = vdwg.mxu0
          %722 = vxpose.xlu0.b32.start [1/16] %v716, 128
          %723 = vxpose.xlu0.b32.cont [2/16] 0.0, 128
          %724 = vxpose.xlu0.b32.cont [3/16] 0.0, 128
          %725 = vxpose.xlu0.b32.cont [4/16] 0.0, 128
          %726 = vxpose.xlu0.b32.cont [5/16] 0.0, 128
          %727 = vxpose.xlu0.b32.cont [6/16] 0.0, 128
          %728 = vxpose.xlu0.b32.cont [7/16] 0.0, 128
          %729 = vxpose.xlu0.b32.cont [8/16] 0.0, 128
          %730 = vxpose.xlu0.b32.cont [9/16] 0.0, 128
          %731 = vxpose.xlu0.b32.cont [10/16] 0.0, 128
          %732 = vxpose.xlu0.b32.cont [11/16] 0.0, 128
          %733 = vxpose.xlu0.b32.cont [12/16] 0.0, 128
          %734 = vxpose.xlu0.b32.cont [13/16] 0.0, 128
          %735 = vxpose.xlu0.b32.cont [14/16] 0.0, 128
          %736 = vxpose.xlu0.b32.cont [15/16] 0.0, 128
          %737 = vxpose.xlu0.b32.end [16/16] 0.0, 128
          %v738 = vpop.trf.xlu0
          %v739 = vpop.trf.xlu0
          %v740 = vpop.trf.xlu0
          %v741 = vpop.trf.xlu0
          %v742 = vpop.trf.xlu0
          %v743 = vpop.trf.xlu0
          %v744 = vpop.trf.xlu0
          %v745 = vpop.trf.xlu0
          %v746 = vpop.trf.xlu0
          %v747 = vpop.trf.xlu0
          %v748 = vpop.trf.xlu0
          %v749 = vpop.trf.xlu0
          %v750 = vpop.trf.xlu0
          %v751 = vpop.trf.xlu0
          %v752 = vpop.trf.xlu0
          %v753 = vpop.trf.xlu0
          %v754 = vpack.c.bf16 %v738, %v738
          %v755 = vpack.c.bf16 %v739, %v739
          %v756 = vpack.c.bf16 %v740, %v740
          %v757 = vpack.c.bf16 %v741, %v741
          %vm758 = vcmask 60416
          %759 = vst.msk [vmem:[#allocation2] sm:$0xf] %vm758, %v754
          %760 = vst.msk [vmem:[#allocation2 + $0x4] sm:$0xf] %vm758, %v755
          %761 = vst.msk [vmem:[#allocation2 + $0x8] sm:$0xf] %vm758, %v756
          %762 = vst.msk [vmem:[#allocation2 + $0xc] sm:$0xf] %vm758, %v757
          %764 = vrot.lane.b32.xlu0 %v716, 120
          %v765 = vpop.permute.xlu0 %764
          %766 = vrot.lane.b32.xlu0 %v716, 112
          %v767 = vpop.permute.xlu0 %766
          %768 = vrot.lane.b32.xlu0 %v716, 104
          %v769 = vpop.permute.xlu0 %768
          %770 = vrot.lane.b32.xlu0 %v716, 96
          %v771 = vpop.permute.xlu0 %770
          %772 = vrot.lane.b32.xlu0 %v765, 96
          %v773 = vpop.permute.xlu0 %772
          %774 = vrot.lane.b32.xlu0 %v767, 96
          %v775 = vpop.permute.xlu0 %774
          %776 = vrot.lane.b32.xlu0 %v769, 96
          %v777 = vpop.permute.xlu0 %776
          %v782 = vcombine.low %v771, %v775
          %v783 = vcombine.high %v771, %v775
          %v785 = vunpack.c.l.s4 1983009808
          %v786 = vunpack.c.0.s8 %v785
          %v787 = vlaneseq
          %v788 = vshrl.u32 %v787, 7
          %v789 = vsub.s32 %v786, %v788
          %v790 = vrot.slane %v782, %v789
          %v792 = vunpack.c.l.s4 1983009808
          %v793 = vunpack.c.0.s8 %v792
          %v794 = vlaneseq
          %v795 = vshrl.u32 %v794, 7
          %v796 = vsub.s32 %v793, %v795
          %v797 = vrot.slane %v783, %v796
          %v798 = vcombine.low %v773, %v777
          %v799 = vcombine.high %v773, %v777
          %v801 = vunpack.c.l.s4 1983009808
          %v802 = vunpack.c.0.s8 %v801
          %v803 = vlaneseq
          %v804 = vshrl.u32 %v803, 7
          %v805 = vsub.s32 %v802, %v804
          %v806 = vrot.slane %v798, %v805
          %v808 = vunpack.c.l.s4 1983009808
          %v809 = vunpack.c.0.s8 %v808
          %v810 = vlaneseq
          %v811 = vshrl.u32 %v810, 7
          %v812 = vsub.s32 %v809, %v811
          %v813 = vrot.slane %v799, %v812
          %v814 = vcombine.low %v790, %v806
          %v815 = vcombine.high %v790, %v806
          %v817 = vunpack.c.l.s4 1934713408
          %v818 = vunpack.c.0.s8 %v817
          %v819 = vlaneseq
          %v820 = vshrl.u32 %v819, 7
          %v821 = vsub.s32 %v818, %v820
          %v822 = vrot.slane %v814, %v821
          %v824 = vunpack.c.l.s4 1934713408
          %v825 = vunpack.c.0.s8 %v824
          %v826 = vlaneseq
          %v827 = vshrl.u32 %v826, 7
          %v828 = vsub.s32 %v825, %v827
          %v829 = vrot.slane %v815, %v828
          %v830 = vcombine.low %v797, %v813
          %v831 = vcombine.high %v797, %v813
          %v833 = vunpack.c.l.s4 1934713408
          %v834 = vunpack.c.0.s8 %v833
          %v835 = vlaneseq
          %v836 = vshrl.u32 %v835, 7
          %v837 = vsub.s32 %v834, %v836
          %v838 = vrot.slane %v830, %v837
          %v840 = vunpack.c.l.s4 1934713408
          %v841 = vunpack.c.0.s8 %v840
          %v842 = vlaneseq
          %v843 = vshrl.u32 %v842, 7
          %v844 = vsub.s32 %v841, %v843
          %v845 = vrot.slane %v831, %v844
          %v846 = vcombine.high %v822, 0.0
          %v847 = vcombine.high %v829, 0.0
          %v848 = vcombine.high %v838, 0.0
          %v849 = vcombine.high %v845, 0.0
          %v850 = vcombine.low %v822, %v829
          %v852 = vunpack.c.l.s4 1983009808
          %v853 = vunpack.c.0.s8 %v852
          %v854 = vlaneseq
          %v855 = vshrl.u32 %v854, 7
          %v856 = vsub.s32 %v853, %v855
          %v857 = vrot.slane %v850, %v856
          %v858 = vcombine.low %v846, %v847
          %v860 = vunpack.c.l.s4 1983009808
          %v861 = vunpack.c.0.s8 %v860
          %v862 = vlaneseq
          %v863 = vshrl.u32 %v862, 7
          %v864 = vsub.s32 %v861, %v863
          %v865 = vrot.slane %v858, %v864
          %v866 = vcombine.low %v838, %v845
          %v868 = vunpack.c.l.s4 1983009808
          %v869 = vunpack.c.0.s8 %v868
          %v870 = vlaneseq
          %v871 = vshrl.u32 %v870, 7
          %v872 = vsub.s32 %v869, %v871
          %v873 = vrot.slane %v866, %v872
          %v874 = vcombine.low %v848, %v849
          %v876 = vunpack.c.l.s4 1983009808
          %v877 = vunpack.c.0.s8 %v876
          %v878 = vlaneseq
          %v879 = vshrl.u32 %v878, 7
          %v880 = vsub.s32 %v877, %v879
          %v881 = vrot.slane %v874, %v880
          %v882 = vcombine.low %v857, %v865
          %v883 = vcombine.high %v857, %v865
          %v885 = vunpack.c.l.s4 1934713408
          %v886 = vunpack.c.0.s8 %v885
          %v887 = vlaneseq
          %v888 = vshrl.u32 %v887, 7
          %v889 = vsub.s32 %v886, %v888
          %v890 = vrot.slane %v882, %v889
          %v892 = vunpack.c.l.s4 1934713408
          %v893 = vunpack.c.0.s8 %v892
          %v894 = vlaneseq
          %v895 = vshrl.u32 %v894, 7
          %v896 = vsub.s32 %v893, %v895
          %v897 = vrot.slane %v883, %v896
          %v898 = vcombine.low %v873, %v881
          %v899 = vcombine.high %v873, %v881
          %v901 = vunpack.c.l.s4 1934713408
          %v902 = vunpack.c.0.s8 %v901
          %v903 = vlaneseq
          %v904 = vshrl.u32 %v903, 7
          %v905 = vsub.s32 %v902, %v904
          %v906 = vrot.slane %v898, %v905
          %v908 = vunpack.c.l.s4 1934713408
          %v909 = vunpack.c.0.s8 %v908
          %v910 = vlaneseq
          %v911 = vshrl.u32 %v910, 7
          %v912 = vsub.s32 %v909, %v911
          %v913 = vrot.slane %v899, %v912
          %v914 = vcombine.low %v890, %v906
          %v915 = vcombine.high %v890, %v906
          %v916 = vcombine.low %v897, %v913
          %v917 = vcombine.high %v897, %v913
          %v918 = vpack.c.bf16 %v914, %v914
          %v919 = vpack.c.bf16 %v915, %v915
          %v920 = vpack.c.bf16 %v916, %v916
          %v921 = vpack.c.bf16 %v917, %v917
          %922 = vst.msk [vmem:[#allocation3] sm:$0xf] %vm758, %v918
          %923 = vst.msk [vmem:[#allocation3 + $0x4] sm:$0xf] %vm758, %v919
          %924 = vst.msk [vmem:[#allocation3 + $0x8] sm:$0xf] %vm758, %v920
          %925 = vst.msk [vmem:[#allocation3 + $0xc] sm:$0xf] %vm758, %v921
          %926 = vxpose.xlu0.b32.start [1/16] %v719, 128
          %927 = vxpose.xlu0.b32.cont [2/16] 0.0, 128
          %928 = vxpose.xlu0.b32.cont [3/16] 0.0, 128
          %929 = vxpose.xlu0.b32.cont [4/16] 0.0, 128
          %930 = vxpose.xlu0.b32.cont [5/16] 0.0, 128
          %931 = vxpose.xlu0.b32.cont [6/16] 0.0, 128
          %932 = vxpose.xlu0.b32.cont [7/16] 0.0, 128
          %933 = vxpose.xlu0.b32.cont [8/16] 0.0, 128
          %934 = vxpose.xlu0.b32.cont [9/16] 0.0, 128
          %935 = vxpose.xlu0.b32.cont [10/16] 0.0, 128
          %936 = vxpose.xlu0.b32.cont [11/16] 0.0, 128
          %937 = vxpose.xlu0.b32.cont [12/16] 0.0, 128
          %938 = vxpose.xlu0.b32.cont [13/16] 0.0, 128
          %939 = vxpose.xlu0.b32.cont [14/16] 0.0, 128
          %940 = vxpose.xlu0.b32.cont [15/16] 0.0, 128
          %941 = vxpose.xlu0.b32.end [16/16] 0.0, 128
          %v942 = vpop.trf.xlu0
          %v943 = vpop.trf.xlu0
          %v944 = vpop.trf.xlu0
          %v945 = vpop.trf.xlu0
          %v946 = vpop.trf.xlu0
          %v947 = vpop.trf.xlu0
          %v948 = vpop.trf.xlu0
          %v949 = vpop.trf.xlu0
          %v950 = vpop.trf.xlu0
          %v951 = vpop.trf.xlu0
          %v952 = vpop.trf.xlu0
          %v953 = vpop.trf.xlu0
          %v954 = vpop.trf.xlu0
          %v955 = vpop.trf.xlu0
          %v956 = vpop.trf.xlu0
          %v957 = vpop.trf.xlu0
          %v958 = vpack.c.bf16 %v942, %v942
          %v959 = vpack.c.bf16 %v943, %v943
          %v960 = vpack.c.bf16 %v944, %v944
          %v961 = vpack.c.bf16 %v945, %v945
          %s962 = scalar_lea.vmem [#allocation2], 16
          %963 = vst.msk [vmem:[%s962] sm:$0xf] %vm758, %v958
          %964 = vst.msk [vmem:[%s962 + $0x4] sm:$0xf] %vm758, %v959
          %965 = vst.msk [vmem:[%s962 + $0x8] sm:$0xf] %vm758, %v960
          %966 = vst.msk [vmem:[%s962 + $0xc] sm:$0xf] %vm758, %v961
          %968 = vrot.lane.b32.xlu0 %v719, 120
          %v969 = vpop.permute.xlu0 %968
          %970 = vrot.lane.b32.xlu0 %v719, 112
          %v971 = vpop.permute.xlu0 %970
          %972 = vrot.lane.b32.xlu0 %v719, 104
          %v973 = vpop.permute.xlu0 %972
          %974 = vrot.lane.b32.xlu0 %v719, 96
          %v975 = vpop.permute.xlu0 %974
          %976 = vrot.lane.b32.xlu0 %v969, 96
          %v977 = vpop.permute.xlu0 %976
          %978 = vrot.lane.b32.xlu0 %v971, 96
          %v979 = vpop.permute.xlu0 %978
          %980 = vrot.lane.b32.xlu0 %v973, 96
          %v981 = vpop.permute.xlu0 %980
          %v986 = vcombine.low %v975, %v979
          %v987 = vcombine.high %v975, %v979
          %v989 = vunpack.c.l.s4 1983009808
          %v990 = vunpack.c.0.s8 %v989
          %v991 = vlaneseq
          %v992 = vshrl.u32 %v991, 7
          %v993 = vsub.s32 %v990, %v992
          %v994 = vrot.slane %v986, %v993
          %v996 = vunpack.c.l.s4 1983009808
          %v997 = vunpack.c.0.s8 %v996
          %v998 = vlaneseq
          %v999 = vshrl.u32 %v998, 7
          %v1000 = vsub.s32 %v997, %v999
          %v1001 = vrot.slane %v987, %v1000
          %v1002 = vcombine.low %v977, %v981
          %v1003 = vcombine.high %v977, %v981
          %v1005 = vunpack.c.l.s4 1983009808
          %v1006 = vunpack.c.0.s8 %v1005
          %v1007 = vlaneseq
          %v1008 = vshrl.u32 %v1007, 7
          %v1009 = vsub.s32 %v1006, %v1008
          %v1010 = vrot.slane %v1002, %v1009
          %v1012 = vunpack.c.l.s4 1983009808
          %v1013 = vunpack.c.0.s8 %v1012
          %v1014 = vlaneseq
          %v1015 = vshrl.u32 %v1014, 7
          %v1016 = vsub.s32 %v1013, %v1015
          %v1017 = vrot.slane %v1003, %v1016
          %v1018 = vcombine.low %v994, %v1010
          %v1019 = vcombine.high %v994, %v1010
          %v1021 = vunpack.c.l.s4 1934713408
          %v1022 = vunpack.c.0.s8 %v1021
          %v1023 = vlaneseq
          %v1024 = vshrl.u32 %v1023, 7
          %v1025 = vsub.s32 %v1022, %v1024
          %v1026 = vrot.slane %v1018, %v1025
          %v1028 = vunpack.c.l.s4 1934713408
          %v1029 = vunpack.c.0.s8 %v1028
          %v1030 = vlaneseq
          %v1031 = vshrl.u32 %v1030, 7
          %v1032 = vsub.s32 %v1029, %v1031
          %v1033 = vrot.slane %v1019, %v1032
          %v1034 = vcombine.low %v1001, %v1017
          %v1035 = vcombine.high %v1001, %v1017
          %v1037 = vunpack.c.l.s4 1934713408
          %v1038 = vunpack.c.0.s8 %v1037
          %v1039 = vlaneseq
          %v1040 = vshrl.u32 %v1039, 7
          %v1041 = vsub.s32 %v1038, %v1040
          %v1042 = vrot.slane %v1034, %v1041
          %v1044 = vunpack.c.l.s4 1934713408
          %v1045 = vunpack.c.0.s8 %v1044
          %v1046 = vlaneseq
          %v1047 = vshrl.u32 %v1046, 7
          %v1048 = vsub.s32 %v1045, %v1047
          %v1049 = vrot.slane %v1035, %v1048
          %v1050 = vcombine.high %v1026, 0.0
          %v1051 = vcombine.high %v1033, 0.0
          %v1052 = vcombine.high %v1042, 0.0
          %v1053 = vcombine.high %v1049, 0.0
          %v1054 = vcombine.low %v1026, %v1033
          %v1056 = vunpack.c.l.s4 1983009808
          %v1057 = vunpack.c.0.s8 %v1056
          %v1058 = vlaneseq
          %v1059 = vshrl.u32 %v1058, 7
          %v1060 = vsub.s32 %v1057, %v1059
          %v1061 = vrot.slane %v1054, %v1060
          %v1062 = vcombine.low %v1050, %v1051
          %v1064 = vunpack.c.l.s4 1983009808
          %v1065 = vunpack.c.0.s8 %v1064
          %v1066 = vlaneseq
          %v1067 = vshrl.u32 %v1066, 7
          %v1068 = vsub.s32 %v1065, %v1067
          %v1069 = vrot.slane %v1062, %v1068
          %v1070 = vcombine.low %v1042, %v1049
          %v1072 = vunpack.c.l.s4 1983009808
          %v1073 = vunpack.c.0.s8 %v1072
          %v1074 = vlaneseq
          %v1075 = vshrl.u32 %v1074, 7
          %v1076 = vsub.s32 %v1073, %v1075
          %v1077 = vrot.slane %v1070, %v1076
          %v1078 = vcombine.low %v1052, %v1053
          %v1080 = vunpack.c.l.s4 1983009808
          %v1081 = vunpack.c.0.s8 %v1080
          %v1082 = vlaneseq
          %v1083 = vshrl.u32 %v1082, 7
          %v1084 = vsub.s32 %v1081, %v1083
          %v1085 = vrot.slane %v1078, %v1084
          %v1086 = vcombine.low %v1061, %v1069
          %v1087 = vcombine.high %v1061, %v1069
          %v1089 = vunpack.c.l.s4 1934713408
          %v1090 = vunpack.c.0.s8 %v1089
          %v1091 = vlaneseq
          %v1092 = vshrl.u32 %v1091, 7
          %v1093 = vsub.s32 %v1090, %v1092
          %v1094 = vrot.slane %v1086, %v1093
          %v1096 = vunpack.c.l.s4 1934713408
          %v1097 = vunpack.c.0.s8 %v1096
          %v1098 = vlaneseq
          %v1099 = vshrl.u32 %v1098, 7
          %v1100 = vsub.s32 %v1097, %v1099
          %v1101 = vrot.slane %v1087, %v1100
          %v1102 = vcombine.low %v1077, %v1085
          %v1103 = vcombine.high %v1077, %v1085
          %v1105 = vunpack.c.l.s4 1934713408
          %v1106 = vunpack.c.0.s8 %v1105
          %v1107 = vlaneseq
          %v1108 = vshrl.u32 %v1107, 7
          %v1109 = vsub.s32 %v1106, %v1108
          %v1110 = vrot.slane %v1102, %v1109
          %v1112 = vunpack.c.l.s4 1934713408
          %v1113 = vunpack.c.0.s8 %v1112
          %v1114 = vlaneseq
          %v1115 = vshrl.u32 %v1114, 7
          %v1116 = vsub.s32 %v1113, %v1115
          %v1117 = vrot.slane %v1103, %v1116
          %v1118 = vcombine.low %v1094, %v1110
          %v1119 = vcombine.high %v1094, %v1110
          %v1120 = vcombine.low %v1101, %v1117
          %v1121 = vcombine.high %v1101, %v1117
          %v1122 = vpack.c.bf16 %v1118, %v1118
          %v1123 = vpack.c.bf16 %v1119, %v1119
          %v1124 = vpack.c.bf16 %v1120, %v1120
          %v1125 = vpack.c.bf16 %v1121, %v1121
          %s1126 = scalar_lea.vmem [#allocation3], 16
          %1127 = vst.msk [vmem:[%s1126] sm:$0xf] %vm758, %v1122
          %1128 = vst.msk [vmem:[%s1126 + $0x4] sm:$0xf] %vm758, %v1123
          %1129 = vst.msk [vmem:[%s1126 + $0x8] sm:$0xf] %vm758, %v1124
          %1130 = vst.msk [vmem:[%s1126 + $0xc] sm:$0xf] %vm758, %v1125
        $region96: #{tpu_custom_call.1} parent=75 // pred_fallthru
          _
        %v1131 = vld [vmem:[%s589] sm:$0xff]
        %vm1132 = vcmask 261120
        %v1133 = vsel %vm1132, %v1131, 0.0
        %1134 = vadd.xlane.f32.xlu0 %v1133
        %v1135 = vpop.xlane.xlu0 %1134
        %v1136 = vrcp.pop 32.0
        %v1137 = vmul.f32 %v1135, %v1136
        %v1138 = vsub.f32 %v1131, %v1137
        %v1139 = vmul.f32 %v1138, %v1138
        %v1140 = vsel %vm1132, %v1139, 0.0
        %1141 = vadd.xlane.f32.xlu0 %v1140
        %v1142 = vpop.xlane.xlu0 %1141
        %v1143 = vmul.f32 %v1142, %v1136
        %v1144 = vadd.f32 %v1143, 1e-06
        %v1145 = vrsqrt.pop %v1144
        %v1146 = vmul.f32 %v1138, %v1145
        %v1147 = vadd.f32 %v606, 1.0
        %v1148 = vlaneseq
        %v1149 = vshrl.u32 %v1148, 7
        %v1150 = vsub.s32 2, %v1149
        %v1151 = vrot.slane %v1147, %v1150
        %v1152 = vmul.f32 %v1146, %v1151
        %v1153 = vlaneseq
        %v1154 = vshrl.u32 %v1153, 7
        %v1155 = vsub.s32 4, %v1154
        %v1156 = vrot.slane %v606, %v1155
        %v1157 = vadd.f32 %v1152, %v1156
        %v1158 = vpack.c.bf16 %v1157, %v1157
        %v1159 = vld [vmem:[#allocation5] sm:$0xf]
        %v1160 = vld [vmem:[#allocation5 + $0x4] sm:$0xf]
        %v1161 = vld [vmem:[#allocation5 + $0x8] sm:$0xf]
        %v1162 = vld [vmem:[#allocation5 + $0xc] sm:$0xf]
        %v1163 = vld [vmem:[%s5] sm:$0x1]
        %v1165 = vlaneseq
        %v1166 = vshrl.u32 %v1165, 7
        %v1167 = vsub.s32 0, %v1166
        %v1168 = vrot.slane %v1163, %v1167
        %v1174 = vunpack.c.l.b16 %v1159
        %v1175 = vunpack.c.l.b16 %v1160
        %v1176 = vunpack.c.l.b16 %v1161
        %v1177 = vunpack.c.l.b16 %v1162
        %v1178 = vpack.c.b16 %v1175, %v1174
        %v1179 = vpack.c.b16 %v1177, %v1176
        %v1183 = vsel %vm1132, %v1158, 0
        %1185 = vmatprep.subr.bf16.mxu0 0
        %1186 = vmatpush1.bf16.msra.mxu0 %v1178
        %1187 = vmatprep.subr.bf16.mxu0 0
        %1188 = vmatpush1.bf16.msra.mxu0 %v1179
        %1189 = vmatprep.subr.bf16.mxu0 0
        %1190 = vmatpush1.bf16.msra.mxu0 0
        %1191 = vmatprep.subr.bf16.mxu0 0
        %1192 = vmatpush1.bf16.msra.mxu0 0
        %1193 = vmatprep.subr.bf16.mxu0 0
        %1194 = vmatpush1.bf16.msra.mxu0 0
        %1195 = vmatprep.subr.bf16.mxu0 0
        %1196 = vmatpush1.bf16.msra.mxu0 0
        %1197 = vmatprep.subr.bf16.mxu0 0
        %1198 = vmatpush1.bf16.msra.mxu0 0
        %1199 = vmatprep.subr.bf16.mxu0 0
        %1200 = vmatpush1.bf16.msra.mxu0 0
        %1201 = vmatprep.subr.bf16.mxu0 0
        %1202 = vmatpush1.bf16.msra.mxu0 0
        %1203 = vmatprep.subr.bf16.mxu0 0
        %1204 = vmatpush1.bf16.msra.mxu0 0
        %1205 = vmatprep.subr.bf16.mxu0 0
        %1206 = vmatpush1.bf16.msra.mxu0 0
        %1207 = vmatprep.subr.bf16.mxu0 0
        %1208 = vmatpush1.bf16.msra.mxu0 0
        %1209 = vmatprep.subr.bf16.mxu0 0
        %1210 = vmatpush1.bf16.msra.mxu0 0
        %1211 = vmatprep.subr.bf16.mxu0 0
        %1212 = vmatpush1.bf16.msra.mxu0 0
        %1213 = vmatprep.subr.bf16.mxu0 0
        %1214 = vmatpush1.bf16.msra.mxu0 0
        %1215 = vmatprep.subr.bf16.mxu0 0
        %1216 = vmatpush1.bf16.msra.mxu0 0
        %1217 = vmatprep.mubr.bf16.mxu0 0
        %1218 = vmatmul.mubr.bf16.gmra.mrb[0].mxu0 %v1183
        %v1219 = vpop.f32.mrb[0].mxu0
        %v1220 = vadd.f32 %v1168, %v1219
        %v1221 = vpop.f32.mrb[0].mxu0
        %v1222 = vpop.f32.mrb[0].mxu0
        %v1223 = vpop.f32.mrb[0].mxu0
        %1224 = vdwg.mxu0
        %1226 = vrot.lane.b32.xlu0 %v1220, 120
        %v1227 = vpop.permute.xlu0 %1226
        %1229 = vrot.lane.b32.xlu0 %v1220, 112
        %v1230 = vpop.permute.xlu0 %1229
        %1232 = vrot.lane.b32.xlu0 %v1220, 104
        %v1233 = vpop.permute.xlu0 %1232
        %v1235 = vcombine.low %v1220, %v1230
        %v1236 = vcombine.high %v1220, %v1230
        %v1238 = vunpack.c.l.s4 1983009808
        %v1239 = vunpack.c.0.s8 %v1238
        %v1240 = vlaneseq
        %v1241 = vshrl.u32 %v1240, 7
        %v1242 = vsub.s32 %v1239, %v1241
        %v1243 = vrot.slane %v1235, %v1242
        %v1245 = vunpack.c.l.s4 1983009808
        %v1246 = vunpack.c.0.s8 %v1245
        %v1247 = vlaneseq
        %v1248 = vshrl.u32 %v1247, 7
        %v1249 = vsub.s32 %v1246, %v1248
        %v1250 = vrot.slane %v1236, %v1249
        %v1251 = vcombine.low %v1227, %v1233
        %v1252 = vcombine.high %v1227, %v1233
        %v1254 = vunpack.c.l.s4 1983009808
        %v1255 = vunpack.c.0.s8 %v1254
        %v1256 = vlaneseq
        %v1257 = vshrl.u32 %v1256, 7
        %v1258 = vsub.s32 %v1255, %v1257
        %v1259 = vrot.slane %v1251, %v1258
        %v1261 = vunpack.c.l.s4 1983009808
        %v1262 = vunpack.c.0.s8 %v1261
        %v1263 = vlaneseq
        %v1264 = vshrl.u32 %v1263, 7
        %v1265 = vsub.s32 %v1262, %v1264
        %v1266 = vrot.slane %v1252, %v1265
        %v1267 = vcombine.low %v1243, %v1259
        %v1268 = vcombine.high %v1243, %v1259
        %v1270 = vunpack.c.l.s4 1934713408
        %v1271 = vunpack.c.0.s8 %v1270
        %v1272 = vlaneseq
        %v1273 = vshrl.u32 %v1272, 7
        %v1274 = vsub.s32 %v1271, %v1273
        %v1275 = vrot.slane %v1267, %v1274
        %v1277 = vunpack.c.l.s4 1934713408
        %v1278 = vunpack.c.0.s8 %v1277
        %v1279 = vlaneseq
        %v1280 = vshrl.u32 %v1279, 7
        %v1281 = vsub.s32 %v1278, %v1280
        %v1282 = vrot.slane %v1268, %v1281
        %v1283 = vcombine.low %v1250, %v1266
        %v1284 = vcombine.high %v1250, %v1266
        %v1286 = vunpack.c.l.s4 1934713408
        %v1287 = vunpack.c.0.s8 %v1286
        %v1288 = vlaneseq
        %v1289 = vshrl.u32 %v1288, 7
        %v1290 = vsub.s32 %v1287, %v1289
        %v1291 = vrot.slane %v1283, %v1290
        %v1293 = vunpack.c.l.s4 1934713408
        %v1294 = vunpack.c.0.s8 %v1293
        %v1295 = vlaneseq
        %v1296 = vshrl.u32 %v1295, 7
        %v1297 = vsub.s32 %v1294, %v1296
        %v1298 = vrot.slane %v1284, %v1297
        %v1299 = vcombine.high %v1275, 0.0
        %v1300 = vcombine.high %v1282, 0.0
        %v1301 = vcombine.high %v1291, 0.0
        %v1302 = vcombine.high %v1298, 0.0
        %v1303 = vcombine.low %v1275, %v1282
        %v1305 = vunpack.c.l.s4 1983009808
        %v1306 = vunpack.c.0.s8 %v1305
        %v1307 = vlaneseq
        %v1308 = vshrl.u32 %v1307, 7
        %v1309 = vsub.s32 %v1306, %v1308
        %v1310 = vrot.slane %v1303, %v1309
        %v1311 = vcombine.low %v1299, %v1300
        %v1313 = vunpack.c.l.s4 1983009808
        %v1314 = vunpack.c.0.s8 %v1313
        %v1315 = vlaneseq
        %v1316 = vshrl.u32 %v1315, 7
        %v1317 = vsub.s32 %v1314, %v1316
        %v1318 = vrot.slane %v1311, %v1317
        %v1319 = vcombine.low %v1291, %v1298
        %v1321 = vunpack.c.l.s4 1983009808
        %v1322 = vunpack.c.0.s8 %v1321
        %v1323 = vlaneseq
        %v1324 = vshrl.u32 %v1323, 7
        %v1325 = vsub.s32 %v1322, %v1324
        %v1326 = vrot.slane %v1319, %v1325
        %v1327 = vcombine.low %v1301, %v1302
        %v1329 = vunpack.c.l.s4 1983009808
        %v1330 = vunpack.c.0.s8 %v1329
        %v1331 = vlaneseq
        %v1332 = vshrl.u32 %v1331, 7
        %v1333 = vsub.s32 %v1330, %v1332
        %v1334 = vrot.slane %v1327, %v1333
        %v1335 = vcombine.low %v1310, %v1318
        %v1336 = vcombine.high %v1310, %v1318
        %v1338 = vunpack.c.l.s4 1934713408
        %v1339 = vunpack.c.0.s8 %v1338
        %v1340 = vlaneseq
        %v1341 = vshrl.u32 %v1340, 7
        %v1342 = vsub.s32 %v1339, %v1341
        %v1343 = vrot.slane %v1335, %v1342
        %v1345 = vunpack.c.l.s4 1934713408
        %v1346 = vunpack.c.0.s8 %v1345
        %v1347 = vlaneseq
        %v1348 = vshrl.u32 %v1347, 7
        %v1349 = vsub.s32 %v1346, %v1348
        %v1350 = vrot.slane %v1336, %v1349
        %v1351 = vcombine.low %v1326, %v1334
        %v1352 = vcombine.high %v1326, %v1334
        %v1354 = vunpack.c.l.s4 1934713408
        %v1355 = vunpack.c.0.s8 %v1354
        %v1356 = vlaneseq
        %v1357 = vshrl.u32 %v1356, 7
        %v1358 = vsub.s32 %v1355, %v1357
        %v1359 = vrot.slane %v1351, %v1358
        %v1361 = vunpack.c.l.s4 1934713408
        %v1362 = vunpack.c.0.s8 %v1361
        %v1363 = vlaneseq
        %v1364 = vshrl.u32 %v1363, 7
        %v1365 = vsub.s32 %v1362, %v1364
        %v1366 = vrot.slane %v1352, %v1365
        %v1367 = vcombine.low %v1343, %v1359
        %v1368 = vcombine.high %v1343, %v1359
        %v1369 = vcombine.low %v1350, %v1366
        %v1370 = vcombine.high %v1350, %v1366
        %v1371 = vpack.c.bf16 %v1367, %v1367
        %v1372 = vpack.c.bf16 %v1368, %v1368
        %v1373 = vpack.c.bf16 %v1369, %v1369
        %v1374 = vpack.c.bf16 %v1370, %v1370
        loop: start=0, step=1, limit=2
        $region97: #{tpu_custom_call.1} parent=75 // loop_pre_header
          _
        $region98: #{tpu_custom_call.1} parent=75 // loop_header
          %s1376 = sphi 0, %s1380
          %p1377 = scmp.ge.s32.totalorder %s1376, 2
          %v1381 = vphi -1e+30, %v1601
          %v1382 = vphi -1e+30, %v1602
          %v1383 = vphi -1e+30, %v1603
          %v1384 = vphi -1e+30, %v1604
          %v1385 = vphi 0.0, %v1645
          %v1386 = vphi 0.0, %v1646
          %v1387 = vphi 0.0, %v1647
          %v1388 = vphi 0.0, %v1648
          %v1389 = vphi 0.0, %v1847
          %v1390 = vphi 0.0, %v1848
          %v1391 = vphi 0.0, %v1849
          %v1392 = vphi 0.0, %v1850
        $region99: #{tpu_custom_call.1} parent=75 // loop_header_branch
          %1379 = sbr.rel (%p1377) target = $region103
        $region100: #{tpu_custom_call.1} parent=75 // loop_body
          %s1393 = smul.u32 %s1376, 4
          %s1394 = smul.addr %s1393, 4
          %s1395 = scalar_lea.vmem [#allocation2], %s1394
          %v1396 = vld [vmem:[%s1395] sm:$0xf]
          %v1397 = vld [vmem:[%s1395 + $0x4] sm:$0xf]
          %v1398 = vld [vmem:[%s1395 + $0x8] sm:$0xf]
          %v1399 = vld [vmem:[%s1395 + $0xc] sm:$0xf]
          %s1400 = smul.u32 %s1376, 8
          %s1401 = scalar_lea.vmem %s603, %s1400
          %v1402 = vld [vmem:[%s1401] sm:$0xff]
          %vm1403 = vcmask 64512
          %v1405 = vsel %vm1403, %v1371, 0
          %vm1407 = vcmask 1043456
          %v1409 = vsel %vm1407, %v1396, 0
          %1411 = vmatprep.subr.bf16.mxu0 0
          %1412 = vmatpush1.bf16.msra.mxu0 %v1409
          %1413 = vmatprep.subr.bf16.mxu0 0
          %1414 = vmatpush1.bf16.msra.mxu0 0
          %1415 = vmatprep.subr.bf16.mxu0 0
          %1416 = vmatpush1.bf16.msra.mxu0 0
          %1417 = vmatprep.subr.bf16.mxu0 0
          %1418 = vmatpush1.bf16.msra.mxu0 0
          %1419 = vmatprep.subr.bf16.mxu0 0
          %1420 = vmatpush1.bf16.msra.mxu0 0
          %1421 = vmatprep.subr.bf16.mxu0 0
          %1422 = vmatpush1.bf16.msra.mxu0 0
          %1423 = vmatprep.subr.bf16.mxu0 0
          %1424 = vmatpush1.bf16.msra.mxu0 0
          %1425 = vmatprep.subr.bf16.mxu0 0
          %1426 = vmatpush1.bf16.msra.mxu0 0
          %1427 = vmatprep.subr.bf16.mxu0 0
          %1428 = vmatpush1.bf16.msra.mxu0 0
          %1429 = vmatprep.subr.bf16.mxu0 0
          %1430 = vmatpush1.bf16.msra.mxu0 0
          %1431 = vmatprep.subr.bf16.mxu0 0
          %1432 = vmatpush1.bf16.msra.mxu0 0
          %1433 = vmatprep.subr.bf16.mxu0 0
          %1434 = vmatpush1.bf16.msra.mxu0 0
          %1435 = vmatprep.subr.bf16.mxu0 0
          %1436 = vmatpush1.bf16.msra.mxu0 0
          %1437 = vmatprep.subr.bf16.mxu0 0
          %1438 = vmatpush1.bf16.msra.mxu0 0
          %1439 = vmatprep.subr.bf16.mxu0 0
          %1440 = vmatpush1.bf16.msra.mxu0 0
          %1441 = vmatprep.subr.bf16.mxu0 0
          %1442 = vmatpush1.bf16.msra.mxu0 0
          %1443 = vmatprep.mubr.bf16.mxu0 0
          %1444 = vmatmul.mubr.bf16.gmra.mrb[0].mxu0 %v1405
          %v1445 = vpop.f32.mrb[0].mxu0
          %v1446 = vadd.f32 %v1402, %v1445
          %v1447 = vpop.f32.mrb[0].mxu0
          %v1448 = vpop.f32.mrb[0].mxu0
          %v1449 = vpop.f32.mrb[0].mxu0
          %1450 = vdwg.mxu0
          %v1452 = vsel %vm1403, %v1372, 0
          %v1455 = vsel %vm1407, %v1397, 0
          %1457 = vmatprep.subr.bf16.mxu0 0
          %1458 = vmatpush1.bf16.msra.mxu0 %v1455
          %1459 = vmatprep.subr.bf16.mxu0 0
          %1460 = vmatpush1.bf16.msra.mxu0 0
          %1461 = vmatprep.subr.bf16.mxu0 0
          %1462 = vmatpush1.bf16.msra.mxu0 0
          %1463 = vmatprep.subr.bf16.mxu0 0
          %1464 = vmatpush1.bf16.msra.mxu0 0
          %1465 = vmatprep.subr.bf16.mxu0 0
          %1466 = vmatpush1.bf16.msra.mxu0 0
          %1467 = vmatprep.subr.bf16.mxu0 0
          %1468 = vmatpush1.bf16.msra.mxu0 0
          %1469 = vmatprep.subr.bf16.mxu0 0
          %1470 = vmatpush1.bf16.msra.mxu0 0
          %1471 = vmatprep.subr.bf16.mxu0 0
          %1472 = vmatpush1.bf16.msra.mxu0 0
          %1473 = vmatprep.subr.bf16.mxu0 0
          %1474 = vmatpush1.bf16.msra.mxu0 0
          %1475 = vmatprep.subr.bf16.mxu0 0
          %1476 = vmatpush1.bf16.msra.mxu0 0
          %1477 = vmatprep.subr.bf16.mxu0 0
          %1478 = vmatpush1.bf16.msra.mxu0 0
          %1479 = vmatprep.subr.bf16.mxu0 0
          %1480 = vmatpush1.bf16.msra.mxu0 0
          %1481 = vmatprep.subr.bf16.mxu0 0
          %1482 = vmatpush1.bf16.msra.mxu0 0
          %1483 = vmatprep.subr.bf16.mxu0 0
          %1484 = vmatpush1.bf16.msra.mxu0 0
          %1485 = vmatprep.subr.bf16.mxu0 0
          %1486 = vmatpush1.bf16.msra.mxu0 0
          %1487 = vmatprep.subr.bf16.mxu0 0
          %1488 = vmatpush1.bf16.msra.mxu0 0
          %1489 = vmatprep.mubr.bf16.mxu0 0
          %1490 = vmatmul.mubr.bf16.gmra.mrb[0].mxu0 %v1452
          %v1491 = vpop.f32.mrb[0].mxu0
          %v1492 = vadd.f32 %v1402, %v1491
          %v1493 = vpop.f32.mrb[0].mxu0
          %v1494 = vpop.f32.mrb[0].mxu0
          %v1495 = vpop.f32.mrb[0].mxu0
          %1496 = vdwg.mxu0
          %v1498 = vsel %vm1403, %v1373, 0
          %v1501 = vsel %vm1407, %v1398, 0
          %1503 = vmatprep.subr.bf16.mxu0 0
          %1504 = vmatpush1.bf16.msra.mxu0 %v1501
          %1505 = vmatprep.subr.bf16.mxu0 0
          %1506 = vmatpush1.bf16.msra.mxu0 0
          %1507 = vmatprep.subr.bf16.mxu0 0
          %1508 = vmatpush1.bf16.msra.mxu0 0
          %1509 = vmatprep.subr.bf16.mxu0 0
          %1510 = vmatpush1.bf16.msra.mxu0 0
          %1511 = vmatprep.subr.bf16.mxu0 0
          %1512 = vmatpush1.bf16.msra.mxu0 0
          %1513 = vmatprep.subr.bf16.mxu0 0
          %1514 = vmatpush1.bf16.msra.mxu0 0
          %1515 = vmatprep.subr.bf16.mxu0 0
          %1516 = vmatpush1.bf16.msra.mxu0 0
          %1517 = vmatprep.subr.bf16.mxu0 0
          %1518 = vmatpush1.bf16.msra.mxu0 0
          %1519 = vmatprep.subr.bf16.mxu0 0
          %1520 = vmatpush1.bf16.msra.mxu0 0
          %1521 = vmatprep.subr.bf16.mxu0 0
          %1522 = vmatpush1.bf16.msra.mxu0 0
          %1523 = vmatprep.subr.bf16.mxu0 0
          %1524 = vmatpush1.bf16.msra.mxu0 0
          %1525 = vmatprep.subr.bf16.mxu0 0
          %1526 = vmatpush1.bf16.msra.mxu0 0
          %1527 = vmatprep.subr.bf16.mxu0 0
          %1528 = vmatpush1.bf16.msra.mxu0 0
          %1529 = vmatprep.subr.bf16.mxu0 0
          %1530 = vmatpush1.bf16.msra.mxu0 0
          %1531 = vmatprep.subr.bf16.mxu0 0
          %1532 = vmatpush1.bf16.msra.mxu0 0
          %1533 = vmatprep.subr.bf16.mxu0 0
          %1534 = vmatpush1.bf16.msra.mxu0 0
          %1535 = vmatprep.mubr.bf16.mxu0 0
          %1536 = vmatmul.mubr.bf16.gmra.mrb[0].mxu0 %v1498
          %v1537 = vpop.f32.mrb[0].mxu0
          %v1538 = vadd.f32 %v1402, %v1537
          %v1539 = vpop.f32.mrb[0].mxu0
          %v1540 = vpop.f32.mrb[0].mxu0
          %v1541 = vpop.f32.mrb[0].mxu0
          %1542 = vdwg.mxu0
          %v1544 = vsel %vm1403, %v1374, 0
          %v1547 = vsel %vm1407, %v1399, 0
          %1549 = vmatprep.subr.bf16.mxu0 0
          %1550 = vmatpush1.bf16.msra.mxu0 %v1547
          %1551 = vmatprep.subr.bf16.mxu0 0
          %1552 = vmatpush1.bf16.msra.mxu0 0
          %1553 = vmatprep.subr.bf16.mxu0 0
          %1554 = vmatpush1.bf16.msra.mxu0 0
          %1555 = vmatprep.subr.bf16.mxu0 0
          %1556 = vmatpush1.bf16.msra.mxu0 0
          %1557 = vmatprep.subr.bf16.mxu0 0
          %1558 = vmatpush1.bf16.msra.mxu0 0
          %1559 = vmatprep.subr.bf16.mxu0 0
          %1560 = vmatpush1.bf16.msra.mxu0 0
          %1561 = vmatprep.subr.bf16.mxu0 0
          %1562 = vmatpush1.bf16.msra.mxu0 0
          %1563 = vmatprep.subr.bf16.mxu0 0
          %1564 = vmatpush1.bf16.msra.mxu0 0
          %1565 = vmatprep.subr.bf16.mxu0 0
          %1566 = vmatpush1.bf16.msra.mxu0 0
          %1567 = vmatprep.subr.bf16.mxu0 0
          %1568 = vmatpush1.bf16.msra.mxu0 0
          %1569 = vmatprep.subr.bf16.mxu0 0
          %1570 = vmatpush1.bf16.msra.mxu0 0
          %1571 = vmatprep.subr.bf16.mxu0 0
          %1572 = vmatpush1.bf16.msra.mxu0 0
          %1573 = vmatprep.subr.bf16.mxu0 0
          %1574 = vmatpush1.bf16.msra.mxu0 0
          %1575 = vmatprep.subr.bf16.mxu0 0
          %1576 = vmatpush1.bf16.msra.mxu0 0
          %1577 = vmatprep.subr.bf16.mxu0 0
          %1578 = vmatpush1.bf16.msra.mxu0 0
          %1579 = vmatprep.subr.bf16.mxu0 0
          %1580 = vmatpush1.bf16.msra.mxu0 0
          %1581 = vmatprep.mubr.bf16.mxu0 0
          %1582 = vmatmul.mubr.bf16.gmra.mrb[0].mxu0 %v1544
          %v1583 = vpop.f32.mrb[0].mxu0
          %v1584 = vadd.f32 %v1402, %v1583
          %v1585 = vpop.f32.mrb[0].mxu0
          %v1586 = vpop.f32.mrb[0].mxu0
          %v1587 = vpop.f32.mrb[0].mxu0
          %1588 = vdwg.mxu0
          %v1589 = vsel %vm1403, %v1446, -inf
          %1590 = vmax.xlane.f32.xlu0 %v1589
          %v1591 = vpop.xlane.xlu0 %1590
          %v1592 = vsel %vm1403, %v1492, -inf
          %1593 = vmax.xlane.f32.xlu0 %v1592
          %v1594 = vpop.xlane.xlu0 %1593
          %v1595 = vsel %vm1403, %v1538, -inf
          %1596 = vmax.xlane.f32.xlu0 %v1595
          %v1597 = vpop.xlane.xlu0 %1596
          %v1598 = vsel %vm1403, %v1584, -inf
          %1599 = vmax.xlane.f32.xlu0 %v1598
          %v1600 = vpop.xlane.xlu0 %1599
          %v1601 = vmax.f32 %v1381, %v1591
          %v1602 = vmax.f32 %v1382, %v1594
          %v1603 = vmax.f32 %v1383, %v1597
          %v1604 = vmax.f32 %v1384, %v1600
          %v1605 = vsub.f32 %v1381, %v1601
          %v1606 = vsub.f32 %v1382, %v1602
          %v1607 = vsub.f32 %v1383, %v1603
          %v1608 = vsub.f32 %v1384, %v1604
          %v1609 = vmul.f32 %v1605, 1.442695
          %v1610 = vpow.pop %v1609
          %v1611 = vmul.f32 %v1606, 1.442695
          %v1612 = vpow.pop %v1611
          %v1613 = vmul.f32 %v1607, 1.442695
          %v1614 = vpow.pop %v1613
          %v1615 = vmul.f32 %v1608, 1.442695
          %v1616 = vpow.pop %v1615
          %v1617 = vsub.f32 %v1446, %v1601
          %v1618 = vsub.f32 %v1492, %v1602
          %v1619 = vsub.f32 %v1538, %v1603
          %v1620 = vsub.f32 %v1584, %v1604
          %v1621 = vmul.f32 %v1617, 1.442695
          %v1622 = vpow.pop %v1621
          %v1623 = vmul.f32 %v1618, 1.442695
          %v1624 = vpow.pop %v1623
          %v1625 = vmul.f32 %v1619, 1.442695
          %v1626 = vpow.pop %v1625
          %v1627 = vmul.f32 %v1620, 1.442695
          %v1628 = vpow.pop %v1627
          %v1629 = vmul.f32 %v1610, %v1385
          %v1630 = vmul.f32 %v1612, %v1386
          %v1631 = vmul.f32 %v1614, %v1387
          %v1632 = vmul.f32 %v1616, %v1388
          %v1633 = vsel %vm1403, %v1622, 0.0
          %1634 = vadd.xlane.f32.xlu0 %v1633
          %v1635 = vpop.xlane.xlu0 %1634
          %v1636 = vsel %vm1403, %v1624, 0.0
          %1637 = vadd.xlane.f32.xlu0 %v1636
          %v1638 = vpop.xlane.xlu0 %1637
          %v1639 = vsel %vm1403, %v1626, 0.0
          %1640 = vadd.xlane.f32.xlu0 %v1639
          %v1641 = vpop.xlane.xlu0 %1640
          %v1642 = vsel %vm1403, %v1628, 0.0
          %1643 = vadd.xlane.f32.xlu0 %v1642
          %v1644 = vpop.xlane.xlu0 %1643
          %v1645 = vadd.f32 %v1629, %v1635
          %v1646 = vadd.f32 %v1630, %v1638
          %v1647 = vadd.f32 %v1631, %v1641
          %v1648 = vadd.f32 %v1632, %v1644
          %v1649 = vmul.f32 %v1610, %v1389
          %v1650 = vmul.f32 %v1612, %v1390
          %v1651 = vmul.f32 %v1614, %v1391
          %v1652 = vmul.f32 %v1616, %v1392
          %v1653 = vpack.c.bf16 %v1622, %v1622
          %v1654 = vpack.c.bf16 %v1624, %v1624
          %v1655 = vpack.c.bf16 %v1626, %v1626
          %v1656 = vpack.c.bf16 %v1628, %v1628
          %s1657 = smul.addr %s1393, 4
          %s1658 = scalar_lea.vmem [#allocation3], %s1657
          %v1659 = vld [vmem:[%s1658] sm:$0xf]
          %v1660 = vld [vmem:[%s1658 + $0x4] sm:$0xf]
          %v1661 = vld [vmem:[%s1658 + $0x8] sm:$0xf]
          %v1662 = vld [vmem:[%s1658 + $0xc] sm:$0xf]
          %v1664 = vsel %vm1403, %v1653, 0
          %v1667 = vsel %vm1407, %v1659, 0
          %1669 = vmatprep.subr.bf16.mxu0 0
          %1670 = vmatpush1.bf16.msra.mxu0 %v1667
          %1671 = vmatprep.subr.bf16.mxu0 0
          %1672 = vmatpush1.bf16.msra.mxu0 0
          %1673 = vmatprep.subr.bf16.mxu0 0
          %1674 = vmatpush1.bf16.msra.mxu0 0
          %1675 = vmatprep.subr.bf16.mxu0 0
          %1676 = vmatpush1.bf16.msra.mxu0 0
          %1677 = vmatprep.subr.bf16.mxu0 0
          %1678 = vmatpush1.bf16.msra.mxu0 0
          %1679 = vmatprep.subr.bf16.mxu0 0
          %1680 = vmatpush1.bf16.msra.mxu0 0
          %1681 = vmatprep.subr.bf16.mxu0 0
          %1682 = vmatpush1.bf16.msra.mxu0 0
          %1683 = vmatprep.subr.bf16.mxu0 0
          %1684 = vmatpush1.bf16.msra.mxu0 0
          %1685 = vmatprep.subr.bf16.mxu0 0
          %1686 = vmatpush1.bf16.msra.mxu0 0
          %1687 = vmatprep.subr.bf16.mxu0 0
          %1688 = vmatpush1.bf16.msra.mxu0 0
          %1689 = vmatprep.subr.bf16.mxu0 0
          %1690 = vmatpush1.bf16.msra.mxu0 0
          %1691 = vmatprep.subr.bf16.mxu0 0
          %1692 = vmatpush1.bf16.msra.mxu0 0
          %1693 = vmatprep.subr.bf16.mxu0 0
          %1694 = vmatpush1.bf16.msra.mxu0 0
          %1695 = vmatprep.subr.bf16.mxu0 0
          %1696 = vmatpush1.bf16.msra.mxu0 0
          %1697 = vmatprep.subr.bf16.mxu0 0
          %1698 = vmatpush1.bf16.msra.mxu0 0
          %1699 = vmatprep.subr.bf16.mxu0 0
          %1700 = vmatpush1.bf16.msra.mxu0 0
          %1701 = vmatprep.mubr.bf16.mxu0 0
          %1702 = vmatmul.mubr.bf16.gmra.mrb[0].mxu0 %v1664
          %v1703 = vpop.f32.mrb[0].mxu0
          %v1704 = vadd.f32 0.0, %v1703
          %v1705 = vpop.f32.mrb[0].mxu0
          %v1706 = vpop.f32.mrb[0].mxu0
          %v1707 = vpop.f32.mrb[0].mxu0
          %1708 = vdwg.mxu0
          %v1710 = vsel %vm1403, %v1654, 0
          %v1713 = vsel %vm1407, %v1660, 0
          %1715 = vmatprep.subr.bf16.mxu0 0
          %1716 = vmatpush1.bf16.msra.mxu0 %v1713
          %1717 = vmatprep.subr.bf16.mxu0 0
          %1718 = vmatpush1.bf16.msra.mxu0 0
          %1719 = vmatprep.subr.bf16.mxu0 0
          %1720 = vmatpush1.bf16.msra.mxu0 0
          %1721 = vmatprep.subr.bf16.mxu0 0
          %1722 = vmatpush1.bf16.msra.mxu0 0
          %1723 = vmatprep.subr.bf16.mxu0 0
          %1724 = vmatpush1.bf16.msra.mxu0 0
          %1725 = vmatprep.subr.bf16.mxu0 0
          %1726 = vmatpush1.bf16.msra.mxu0 0
          %1727 = vmatprep.subr.bf16.mxu0 0
          %1728 = vmatpush1.bf16.msra.mxu0 0
          %1729 = vmatprep.subr.bf16.mxu0 0
          %1730 = vmatpush1.bf16.msra.mxu0 0
          %1731 = vmatprep.subr.bf16.mxu0 0
          %1732 = vmatpush1.bf16.msra.mxu0 0
          %1733 = vmatprep.subr.bf16.mxu0 0
          %1734 = vmatpush1.bf16.msra.mxu0 0
          %1735 = vmatprep.subr.bf16.mxu0 0
          %1736 = vmatpush1.bf16.msra.mxu0 0
          %1737 = vmatprep.subr.bf16.mxu0 0
          %1738 = vmatpush1.bf16.msra.mxu0 0
          %1739 = vmatprep.subr.bf16.mxu0 0
          %1740 = vmatpush1.bf16.msra.mxu0 0
          %1741 = vmatprep.subr.bf16.mxu0 0
          %1742 = vmatpush1.bf16.msra.mxu0 0
          %1743 = vmatprep.subr.bf16.mxu0 0
          %1744 = vmatpush1.bf16.msra.mxu0 0
          %1745 = vmatprep.subr.bf16.mxu0 0
          %1746 = vmatpush1.bf16.msra.mxu0 0
          %1747 = vmatprep.mubr.bf16.mxu0 0
          %1748 = vmatmul.mubr.bf16.gmra.mrb[0].mxu0 %v1710
          %v1749 = vpop.f32.mrb[0].mxu0
          %v1750 = vadd.f32 0.0, %v1749
          %v1751 = vpop.f32.mrb[0].mxu0
          %v1752 = vpop.f32.mrb[0].mxu0
          %v1753 = vpop.f32.mrb[0].mxu0
          %1754 = vdwg.mxu0
          %v1756 = vsel %vm1403, %v1655, 0
          %v1759 = vsel %vm1407, %v1661, 0
          %1761 = vmatprep.subr.bf16.mxu0 0
          %1762 = vmatpush1.bf16.msra.mxu0 %v1759
          %1763 = vmatprep.subr.bf16.mxu0 0
          %1764 = vmatpush1.bf16.msra.mxu0 0
          %1765 = vmatprep.subr.bf16.mxu0 0
          %1766 = vmatpush1.bf16.msra.mxu0 0
          %1767 = vmatprep.subr.bf16.mxu0 0
          %1768 = vmatpush1.bf16.msra.mxu0 0
          %1769 = vmatprep.subr.bf16.mxu0 0
          %1770 = vmatpush1.bf16.msra.mxu0 0
          %1771 = vmatprep.subr.bf16.mxu0 0
          %1772 = vmatpush1.bf16.msra.mxu0 0
          %1773 = vmatprep.subr.bf16.mxu0 0
          %1774 = vmatpush1.bf16.msra.mxu0 0
          %1775 = vmatprep.subr.bf16.mxu0 0
          %1776 = vmatpush1.bf16.msra.mxu0 0
          %1777 = vmatprep.subr.bf16.mxu0 0
          %1778 = vmatpush1.bf16.msra.mxu0 0
          %1779 = vmatprep.subr.bf16.mxu0 0
          %1780 = vmatpush1.bf16.msra.mxu0 0
          %1781 = vmatprep.subr.bf16.mxu0 0
          %1782 = vmatpush1.bf16.msra.mxu0 0
          %1783 = vmatprep.subr.bf16.mxu0 0
          %1784 = vmatpush1.bf16.msra.mxu0 0
          %1785 = vmatprep.subr.bf16.mxu0 0
          %1786 = vmatpush1.bf16.msra.mxu0 0
          %1787 = vmatprep.subr.bf16.mxu0 0
          %1788 = vmatpush1.bf16.msra.mxu0 0
          %1789 = vmatprep.subr.bf16.mxu0 0
          %1790 = vmatpush1.bf16.msra.mxu0 0
          %1791 = vmatprep.subr.bf16.mxu0 0
          %1792 = vmatpush1.bf16.msra.mxu0 0
          %1793 = vmatprep.mubr.bf16.mxu0 0
          %1794 = vmatmul.mubr.bf16.gmra.mrb[0].mxu0 %v1756
          %v1795 = vpop.f32.mrb[0].mxu0
          %v1796 = vadd.f32 0.0, %v1795
          %v1797 = vpop.f32.mrb[0].mxu0
          %v1798 = vpop.f32.mrb[0].mxu0
          %v1799 = vpop.f32.mrb[0].mxu0
          %1800 = vdwg.mxu0
          %v1802 = vsel %vm1403, %v1656, 0
          %v1805 = vsel %vm1407, %v1662, 0
          %1807 = vmatprep.subr.bf16.mxu0 0
          %1808 = vmatpush1.bf16.msra.mxu0 %v1805
          %1809 = vmatprep.subr.bf16.mxu0 0
          %1810 = vmatpush1.bf16.msra.mxu0 0
          %1811 = vmatprep.subr.bf16.mxu0 0
          %1812 = vmatpush1.bf16.msra.mxu0 0
          %1813 = vmatprep.subr.bf16.mxu0 0
          %1814 = vmatpush1.bf16.msra.mxu0 0
          %1815 = vmatprep.subr.bf16.mxu0 0
          %1816 = vmatpush1.bf16.msra.mxu0 0
          %1817 = vmatprep.subr.bf16.mxu0 0
          %1818 = vmatpush1.bf16.msra.mxu0 0
          %1819 = vmatprep.subr.bf16.mxu0 0
          %1820 = vmatpush1.bf16.msra.mxu0 0
          %1821 = vmatprep.subr.bf16.mxu0 0
          %1822 = vmatpush1.bf16.msra.mxu0 0
          %1823 = vmatprep.subr.bf16.mxu0 0
          %1824 = vmatpush1.bf16.msra.mxu0 0
          %1825 = vmatprep.subr.bf16.mxu0 0
          %1826 = vmatpush1.bf16.msra.mxu0 0
          %1827 = vmatprep.subr.bf16.mxu0 0
          %1828 = vmatpush1.bf16.msra.mxu0 0
          %1829 = vmatprep.subr.bf16.mxu0 0
          %1830 = vmatpush1.bf16.msra.mxu0 0
          %1831 = vmatprep.subr.bf16.mxu0 0
          %1832 = vmatpush1.bf16.msra.mxu0 0
          %1833 = vmatprep.subr.bf16.mxu0 0
          %1834 = vmatpush1.bf16.msra.mxu0 0
          %1835 = vmatprep.subr.bf16.mxu0 0
          %1836 = vmatpush1.bf16.msra.mxu0 0
          %1837 = vmatprep.subr.bf16.mxu0 0
          %1838 = vmatpush1.bf16.msra.mxu0 0
          %1839 = vmatprep.mubr.bf16.mxu0 0
          %1840 = vmatmul.mubr.bf16.gmra.mrb[0].mxu0 %v1802
          %v1841 = vpop.f32.mrb[0].mxu0
          %v1842 = vadd.f32 0.0, %v1841
          %v1843 = vpop.f32.mrb[0].mxu0
          %v1844 = vpop.f32.mrb[0].mxu0
          %v1845 = vpop.f32.mrb[0].mxu0
          %1846 = vdwg.mxu0
          %v1847 = vadd.f32 %v1649, %v1704
          %v1848 = vadd.f32 %v1650, %v1750
          %v1849 = vadd.f32 %v1651, %v1796
          %v1850 = vadd.f32 %v1652, %v1842
        $region101: #{tpu_custom_call.1} parent=75 // loop_footer
          %s1380 = sadd.s32 1, %s1376
        $region102: #{tpu_custom_call.1} parent=75 // loop_footer_branch
          %1375 = sbr.rel target = $region98
        $region103: #{tpu_custom_call.1} parent=75 // loop_exit
          _
        %v1851 = vrcp.pop %v1385
        %v1852 = vrcp.pop %v1386
        %v1853 = vrcp.pop %v1387
        %v1854 = vrcp.pop %v1388
        %v1855 = vmul.f32 %v1389, %v1851
        %vm1856 = vcmask 64512
        %1857 = vst.msk [vmem:[#allocation4] sm:$0xff] %vm1856, %v1855
        %v1858 = vmul.f32 %v1390, %v1852
        %1860 = vrot.lane.b32.xlu0 %v1858, 8
        %v1861 = vpop.permute.xlu0 %1860
        %vm1863 = vcmask 130112
        %1864 = vst.msk [vmem:[#allocation4] sm:$0xff] %vm1863, %v1861
        %v1865 = vmul.f32 %v1391, %v1853
        %1867 = vrot.lane.b32.xlu0 %v1865, 16
        %v1868 = vpop.permute.xlu0 %1867
        %vm1870 = vcmask 195712
        %1871 = vst.msk [vmem:[#allocation4] sm:$0xff] %vm1870, %v1868
        %v1872 = vmul.f32 %v1392, %v1854
        %1874 = vrot.lane.b32.xlu0 %v1872, 24
        %v1875 = vpop.permute.xlu0 %1874
        %vm1877 = vcmask 261312
        %1878 = vst.msk [vmem:[#allocation4] sm:$0xff] %vm1877, %v1875
        %v1879 = vld [vmem:[#allocation4] sm:$0xff]
        %v1880 = vpack.c.bf16 %v1879, %v1879
        %v1881 = vld [vmem:[#allocation10] sm:$0xf]
        %v1882 = vld [vmem:[#allocation10 + $0x4] sm:$0xf]
        %v1883 = vld [vmem:[#allocation10 + $0x8] sm:$0xf]
        %v1884 = vld [vmem:[#allocation10 + $0xc] sm:$0xf]
        %v1885 = vld [vmem:[#allocation11] sm:$0x1]
        %v1887 = vlaneseq
        %v1888 = vshrl.u32 %v1887, 7
        %v1889 = vsub.s32 0, %v1888
        %v1890 = vrot.slane %v1885, %v1889
        %v1896 = vunpack.c.l.b16 %v1881
        %v1897 = vunpack.c.l.b16 %v1882
        %v1898 = vunpack.c.l.b16 %v1883
        %v1899 = vunpack.c.l.b16 %v1884
        %v1900 = vpack.c.b16 %v1897, %v1896
        %v1901 = vpack.c.b16 %v1899, %v1898
        %v1905 = vsel %vm1132, %v1880, 0
        %1907 = vmatprep.subr.bf16.mxu0 0
        %1908 = vmatpush1.bf16.msra.mxu0 %v1900
        %1909 = vmatprep.subr.bf16.mxu0 0
        %1910 = vmatpush1.bf16.msra.mxu0 %v1901
        %1911 = vmatprep.subr.bf16.mxu0 0
        %1912 = vmatpush1.bf16.msra.mxu0 0
        %1913 = vmatprep.subr.bf16.mxu0 0
        %1914 = vmatpush1.bf16.msra.mxu0 0
        %1915 = vmatprep.subr.bf16.mxu0 0
        %1916 = vmatpush1.bf16.msra.mxu0 0
        %1917 = vmatprep.subr.bf16.mxu0 0
        %1918 = vmatpush1.bf16.msra.mxu0 0
        %1919 = vmatprep.subr.bf16.mxu0 0
        %1920 = vmatpush1.bf16.msra.mxu0 0
        %1921 = vmatprep.subr.bf16.mxu0 0
        %1922 = vmatpush1.bf16.msra.mxu0 0
        %1923 = vmatprep.subr.bf16.mxu0 0
        %1924 = vmatpush1.bf16.msra.mxu0 0
        %1925 = vmatprep.subr.bf16.mxu0 0
        %1926 = vmatpush1.bf16.msra.mxu0 0
        %1927 = vmatprep.subr.bf16.mxu0 0
        %1928 = vmatpush1.bf16.msra.mxu0 0
        %1929 = vmatprep.subr.bf16.mxu0 0
        %1930 = vmatpush1.bf16.msra.mxu0 0
        %1931 = vmatprep.subr.bf16.mxu0 0
        %1932 = vmatpush1.bf16.msra.mxu0 0
        %1933 = vmatprep.subr.bf16.mxu0 0
        %1934 = vmatpush1.bf16.msra.mxu0 0
        %1935 = vmatprep.subr.bf16.mxu0 0
        %1936 = vmatpush1.bf16.msra.mxu0 0
        %1937 = vmatprep.subr.bf16.mxu0 0
        %1938 = vmatpush1.bf16.msra.mxu0 0
        %1939 = vmatprep.mubr.bf16.mxu0 0
        %1940 = vmatmul.mubr.bf16.gmra.mrb[0].mxu0 %v1905
        %v1941 = vpop.f32.mrb[0].mxu0
        %v1942 = vadd.f32 %v1890, %v1941
        %v1943 = vpop.f32.mrb[0].mxu0
        %v1944 = vpop.f32.mrb[0].mxu0
        %v1945 = vpop.f32.mrb[0].mxu0
        %1946 = vdwg.mxu0
        %v1947 = vlaneseq
        %v1948 = vshrl.u32 %v1947, 7
        %v1949 = vsub.s32 0, %v1948
        %v1950 = vrot.slane %v606, %v1949
        %v1951 = vmul.f32 %v1942, %v1950
        %v1952 = vadd.f32 %v1131, %v1951
        %v1953 = vsel %vm1132, %v1952, 0.0
        %1954 = vadd.xlane.f32.xlu0 %v1953
        %v1955 = vpop.xlane.xlu0 %1954
        %v1956 = vmul.f32 %v1955, %v1136
        %v1957 = vsub.f32 %v1952, %v1956
        %v1958 = vmul.f32 %v1957, %v1957
        %v1959 = vsel %vm1132, %v1958, 0.0
        %1960 = vadd.xlane.f32.xlu0 %v1959
        %v1961 = vpop.xlane.xlu0 %1960
        %v1962 = vmul.f32 %v1961, %v1136
        %v1963 = vadd.f32 %v1962, 1e-06
        %v1964 = vrsqrt.pop %v1963
        %v1965 = vmul.f32 %v1957, %v1964
        %v1966 = vlaneseq
        %v1967 = vshrl.u32 %v1966, 7
        %v1968 = vsub.s32 3, %v1967
        %v1969 = vrot.slane %v1147, %v1968
        %v1970 = vmul.f32 %v1965, %v1969
        %v1971 = vlaneseq
        %v1972 = vshrl.u32 %v1971, 7
        %v1973 = vsub.s32 5, %v1972
        %v1974 = vrot.slane %v606, %v1973
        %v1975 = vadd.f32 %v1970, %v1974
        %v1976 = vpack.c.bf16 %v1975, %v1975
        %v1977 = vld [vmem:[%s10] sm:$0xf]
        %v1978 = vld [vmem:[%s10 + $0x4] sm:$0xf]
        %v1979 = vld [vmem:[%s10 + $0x8] sm:$0xf]
        %v1980 = vld [vmem:[%s10 + $0xc] sm:$0xf]
        %v1981 = vld [vmem:[%s11] sm:$0x1]
        %v1983 = vlaneseq
        %v1984 = vshrl.u32 %v1983, 7
        %v1985 = vsub.s32 0, %v1984
        %v1986 = vrot.slane %v1981, %v1985
        %v1992 = vunpack.c.l.b16 %v1977
        %v1993 = vunpack.c.l.b16 %v1978
        %v1994 = vunpack.c.l.b16 %v1979
        %v1995 = vunpack.c.l.b16 %v1980
        %v1996 = vpack.c.b16 %v1993, %v1992
        %v1997 = vpack.c.b16 %v1995, %v1994
        %v2001 = vsel %vm1132, %v1976, 0
        %2003 = vmatprep.subr.bf16.mxu0 0
        %2004 = vmatpush1.bf16.msra.mxu0 %v1996
        %2005 = vmatprep.subr.bf16.mxu0 0
        %2006 = vmatpush1.bf16.msra.mxu0 %v1997
        %2007 = vmatprep.subr.bf16.mxu0 0
        %2008 = vmatpush1.bf16.msra.mxu0 0
        %2009 = vmatprep.subr.bf16.mxu0 0
        %2010 = vmatpush1.bf16.msra.mxu0 0
        %2011 = vmatprep.subr.bf16.mxu0 0
        %2012 = vmatpush1.bf16.msra.mxu0 0
        %2013 = vmatprep.subr.bf16.mxu0 0
        %2014 = vmatpush1.bf16.msra.mxu0 0
        %2015 = vmatprep.subr.bf16.mxu0 0
        %2016 = vmatpush1.bf16.msra.mxu0 0
        %2017 = vmatprep.subr.bf16.mxu0 0
        %2018 = vmatpush1.bf16.msra.mxu0 0
        %2019 = vmatprep.subr.bf16.mxu0 0
        %2020 = vmatpush1.bf16.msra.mxu0 0
        %2021 = vmatprep.subr.bf16.mxu0 0
        %2022 = vmatpush1.bf16.msra.mxu0 0
        %2023 = vmatprep.subr.bf16.mxu0 0
        %2024 = vmatpush1.bf16.msra.mxu0 0
        %2025 = vmatprep.subr.bf16.mxu0 0
        %2026 = vmatpush1.bf16.msra.mxu0 0
        %2027 = vmatprep.subr.bf16.mxu0 0
        %2028 = vmatpush1.bf16.msra.mxu0 0
        %2029 = vmatprep.subr.bf16.mxu0 0
        %2030 = vmatpush1.bf16.msra.mxu0 0
        %2031 = vmatprep.subr.bf16.mxu0 0
        %2032 = vmatpush1.bf16.msra.mxu0 0
        %2033 = vmatprep.subr.bf16.mxu0 0
        %2034 = vmatpush1.bf16.msra.mxu0 0
        %2035 = vmatprep.mubr.bf16.mxu0 0
        %2036 = vmatmul.mubr.bf16.gmra.mrb[0].mxu0 %v2001
        %v2037 = vpop.f32.mrb[0].mxu0
        %v2038 = vadd.f32 %v1986, %v2037
        %v2039 = vpop.f32.mrb[0].mxu0
        %v2040 = vpop.f32.mrb[0].mxu0
        %v2041 = vpop.f32.mrb[0].mxu0
        %2042 = vdwg.mxu0
        %v2043 = vmul.f32 %v2038, 0.5
        %v2044 = vmul.f32 %v2038, 0.044715
        %v2045 = vmul.f32 %v2044, %v2038
        %v2046 = vmul.f32 %v2045, %v2038
        %v2047 = vadd.f32 %v2038, %v2046
        %v2048 = vmul.f32 %v2047, 0.7978846
        %v2049 = vtanh.pop %v2048
        %v2050 = vadd.f32 %v2049, 1.0
        %v2051 = vmul.f32 %v2043, %v2050
        %v2052 = vpack.c.bf16 %v2051, %v2051
        %v2053 = vld [vmem:[%s12] sm:$0xf]
        %v2054 = vld [vmem:[%s12 + $0x4] sm:$0xf]
        %v2055 = vld [vmem:[%s12 + $0x8] sm:$0xf]
        %v2056 = vld [vmem:[%s12 + $0xc] sm:$0xf]
        %v2057 = vld [vmem:[%s12 + $0x10] sm:$0xf]
        %v2058 = vld [vmem:[%s12 + $0x14] sm:$0xf]
        %v2059 = vld [vmem:[%s12 + $0x18] sm:$0xf]
        %v2060 = vld [vmem:[%s12 + $0x1c] sm:$0xf]
        %v2061 = vld [vmem:[%s12 + $0x20] sm:$0xf]
        %v2062 = vld [vmem:[%s12 + $0x24] sm:$0xf]
        %v2063 = vld [vmem:[%s12 + $0x28] sm:$0xf]
        %v2064 = vld [vmem:[%s12 + $0x2c] sm:$0xf]
        %v2065 = vld [vmem:[%s12 + $0x30] sm:$0xf]
        %v2066 = vld [vmem:[%s12 + $0x34] sm:$0xf]
        %v2067 = vld [vmem:[%s12 + $0x38] sm:$0xf]
        %v2068 = vld [vmem:[%s12 + $0x3c] sm:$0xf]
        %v2069 = vld [vmem:[%s13] sm:$0x1]
        %v2071 = vlaneseq
        %v2072 = vshrl.u32 %v2071, 7
        %v2073 = vsub.s32 0, %v2072
        %v2074 = vrot.slane %v2069, %v2073
        %v2092 = vunpack.c.l.b16 %v2053
        %v2093 = vunpack.c.l.b16 %v2054
        %v2094 = vunpack.c.l.b16 %v2055
        %v2095 = vunpack.c.l.b16 %v2056
        %v2096 = vunpack.c.l.b16 %v2057
        %v2097 = vunpack.c.l.b16 %v2058
        %v2098 = vunpack.c.l.b16 %v2059
        %v2099 = vunpack.c.l.b16 %v2060
        %v2100 = vunpack.c.l.b16 %v2061
        %v2101 = vunpack.c.l.b16 %v2062
        %v2102 = vunpack.c.l.b16 %v2063
        %v2103 = vunpack.c.l.b16 %v2064
        %v2104 = vunpack.c.l.b16 %v2065
        %v2105 = vunpack.c.l.b16 %v2066
        %v2106 = vunpack.c.l.b16 %v2067
        %v2107 = vunpack.c.l.b16 %v2068
        %v2108 = vpack.c.b16 %v2093, %v2092
        %v2109 = vpack.c.b16 %v2095, %v2094
        %v2110 = vpack.c.b16 %v2097, %v2096
        %v2111 = vpack.c.b16 %v2099, %v2098
        %v2112 = vpack.c.b16 %v2101, %v2100
        %v2113 = vpack.c.b16 %v2103, %v2102
        %v2114 = vpack.c.b16 %v2105, %v2104
        %v2115 = vpack.c.b16 %v2107, %v2106
        %2124 = vmatprep.subr.bf16.mxu0 0
        %2125 = vmatpush1.bf16.msra.mxu0 %v2108
        %2126 = vmatprep.subr.bf16.mxu0 0
        %2127 = vmatpush1.bf16.msra.mxu0 %v2109
        %2128 = vmatprep.subr.bf16.mxu0 0
        %2129 = vmatpush1.bf16.msra.mxu0 %v2110
        %2130 = vmatprep.subr.bf16.mxu0 0
        %2131 = vmatpush1.bf16.msra.mxu0 %v2111
        %2132 = vmatprep.subr.bf16.mxu0 0
        %2133 = vmatpush1.bf16.msra.mxu0 %v2112
        %2134 = vmatprep.subr.bf16.mxu0 0
        %2135 = vmatpush1.bf16.msra.mxu0 %v2113
        %2136 = vmatprep.subr.bf16.mxu0 0
        %2137 = vmatpush1.bf16.msra.mxu0 %v2114
        %2138 = vmatprep.subr.bf16.mxu0 0
        %2139 = vmatpush1.bf16.msra.mxu0 %v2115
        %2140 = vmatprep.subr.bf16.mxu0 0
        %2141 = vmatpush1.bf16.msra.mxu0 0
        %2142 = vmatprep.subr.bf16.mxu0 0
        %2143 = vmatpush1.bf16.msra.mxu0 0
        %2144 = vmatprep.subr.bf16.mxu0 0
        %2145 = vmatpush1.bf16.msra.mxu0 0
        %2146 = vmatprep.subr.bf16.mxu0 0
        %2147 = vmatpush1.bf16.msra.mxu0 0
        %2148 = vmatprep.subr.bf16.mxu0 0
        %2149 = vmatpush1.bf16.msra.mxu0 0
        %2150 = vmatprep.subr.bf16.mxu0 0
        %2151 = vmatpush1.bf16.msra.mxu0 0
        %2152 = vmatprep.subr.bf16.mxu0 0
        %2153 = vmatpush1.bf16.msra.mxu0 0
        %2154 = vmatprep.subr.bf16.mxu0 0
        %2155 = vmatpush1.bf16.msra.mxu0 0
        %2156 = vmatprep.mubr.bf16.mxu0 0
        %2157 = vmatmul.mubr.bf16.gmra.mrb[0].mxu0 %v2052
        %v2158 = vpop.f32.mrb[0].mxu0
        %v2159 = vadd.f32 %v2074, %v2158
        %v2160 = vpop.f32.mrb[0].mxu0
        %v2161 = vpop.f32.mrb[0].mxu0
        %v2162 = vpop.f32.mrb[0].mxu0
        %2163 = vdwg.mxu0
        %v2164 = vlaneseq
        %v2165 = vshrl.u32 %v2164, 7
        %v2166 = vsub.s32 1, %v2165
        %v2167 = vrot.slane %v606, %v2166
        %v2168 = vmul.f32 %v2159, %v2167
        %v2169 = vadd.f32 %v1952, %v2168
        %2170 = vst.msk [vmem:[%s581] sm:$0xff] %vm1132, %v2169
        %s2171 = sand.u32 %s369, 1
        %s2172 = scalar_lea.sflag [#allocation7], %s2171
        %s2173 = sand.u32 %s369, 1
        %s2174 = smul.addr %s2173, 8
        %s2175 = scalar_lea.vmem [#allocation13], %s2174
        // Predicated region
        $region104: #{tpu_custom_call.1} parent=75 // pred_check
          %p2176 = pneg %p379
        $region105: #{tpu_custom_call.1} parent=75 // pred_check_branch
          %2178 = sbr.rel (%p2176) target = $region107
        $region106: #{tpu_custom_call.1} parent=75 // pred_region
          %s2180 = ssub.s32 128, 128
          %2181 = vsyncadd %s2172, %s2180
          %s2182 = smul.addr %s35, 2
          %s2183 = sadd.s32 %s36, %s2182
          %s2184 = smul.addr %s2183, 128
          %s2185 = scalar_lea.hbm %s14, %s2184
          %s2187 = sshll.u32 %s2175, 4
          %s2188 = int_to_ptr.vmem [resolvable:$true] %s2187
          %2190 = dma.vmem_to_hbm [thread:$0]  %s2188, 128, %s2185, %s2172
        $region107: #{tpu_custom_call.1} parent=75 // pred_fallthru
          _
      $region76: #{tpu_custom_call.1} parent=5 // pred_fallthru
        _
      %p2191 = scmp.le.s32.totalorder 2, %s26
      // Predicated region
      $region108: #{tpu_custom_call.1} parent=5 // pred_check
        %p2192 = pneg %p2191
      $region109: #{tpu_custom_call.1} parent=5 // pred_check_branch
        %2194 = sbr.rel (%p2192) target = $region111
      $region110: #{tpu_custom_call.1} parent=5 // pred_region
        %s2195 = ssub.s32 %s26, 2
        // Predicated region
        $region112: #{tpu_custom_call.1} parent=110 // pred_check
          %p2196 = pneg %p385
        $region113: #{tpu_custom_call.1} parent=110 // pred_check_branch
          %2198 = sbr.rel (%p2196) target = $region115
        $region114: #{tpu_custom_call.1} parent=110 // pred_region
          %s2199 = sand.u32 %s370, 1
          %s2200 = scalar_lea.sflag [#allocation7], %s2199
          %s2201 = sand.u32 %s370, 1
          %s2202 = smul.addr %s2201, 8
          %s2203 = scalar_lea.vmem [#allocation13], %s2202
          %2204 = dma.done %s2200, 128
        $region115: #{tpu_custom_call.1} parent=110 // pred_fallthru
          _
      $region111: #{tpu_custom_call.1} parent=5 // pred_fallthru
        _
    $region6: #{tpu_custom_call.1} parent=1 // loop_footer
      %s30 = sadd.s32 1, %s26
    $region7: #{tpu_custom_call.1} parent=1 // loop_footer_branch
      %25 = sbr.rel target = $region3
    $region8: #{tpu_custom_call.1} parent=1 // loop_exit
      _
    %2205 = vsyncpa [#allocation6], 1
    %s2206 = scalar_lea.sflag [#allocation6], 1
    %2207 = vsyncpa %s2206, 1
    %2208 = vsyncpa [#allocation9], 1
    %2209 = vsyncpa [#allocation12], 1
    %2210 = vsyncpa [#allocation7], 1
    %s2211 = scalar_lea.sflag [#allocation7], 1
    %2212 = vsyncpa %s2211, 1

</llo_original>
